<compile_context>
chip_gen: v7x
topology: tpu7x:2x2x1
jax: 0.10.0
libtpu: 0.0.40
codegen_flags: <defaults>
</compile_context>

<pallas_src>
import jax
import jax.numpy as jnp
from jax.experimental import pallas as pl
from jax.experimental.pallas import tpu as pltpu

IN_FEATURES = 100
IN_PAD = 128           # fc1 input dim padded to a full lane width (left at 128:
                       # fc1 is ~9% of FLOPs and the kernel is HBM-bound).
H1, H2, H3 = 256, 256, 1024
MAX_TM = 512           # batch-tile rows; <=512 fits v5e's 16 MiB scoped VMEM default


def _round_up(x, m):
    return ((x + m - 1) // m) * m


def gnet_kernel(x_ref, w1_ref, w2_ref, w3_ref, b_ref, o_ref):
    # Biases live concatenated in one (1, 1536) f32 buffer: [b1 | b2 | b3].
    b1 = b_ref[:, 0:H1]
    b2 = b_ref[:, H1:H1 + H2]
    b3 = b_ref[:, H1 + H2:H1 + H2 + H3]

    # fc1 + relu  (bf16 operands on the MXU, f32 accumulate, f32 epilogue).
    # x arrives already bf16 (cast + pad fused into the wrapper's XLA prologue).
    h1 = jnp.dot(x_ref[...], w1_ref[...], preferred_element_type=jnp.float32)
    h1 = jnp.maximum(h1 + b1, 0.0)

    # fc2 + relu
    h2 = jnp.dot(h1.astype(jnp.bfloat16), w2_ref[...],
                 preferred_element_type=jnp.float32)
    h2 = jnp.maximum(h2 + b2, 0.0)

    # fc3 + relu
    h3 = jnp.dot(h2.astype(jnp.bfloat16), w3_ref[...],
                 preferred_element_type=jnp.float32)
    h3 = jnp.maximum(h3 + b3, 0.0)

    o_ref[...] = h3.astype(o_ref.dtype)


def _pick_tiling(B):
    """Row-tile / grid selection.

    - tiles are multiples of 16 rows (bf16 sublane packing)
    - tiles never exceed MAX_TM (VMEM on all generations, incl. v5e default)
    - once the batch is big enough we always emit >= 2 grid steps so both
      v7x TensorCores get work via the 'parallel' grid axis
    - tile = ceil(rows / steps) so common batch sizes incur no row padding.
    """
    b16 = _round_up(max(B, 1), 16)
    if b16 >= 64:
        steps = max(2, -(-b16 // MAX_TM))
        tm = _round_up(-(-b16 // steps), 16)
    else:
        tm = b16
    b_pad = _round_up(b16, tm)
    return tm, b_pad, b_pad // tm


def gnet_forward(x, params, out_dtype=jnp.bfloat16):
    """Batched forward: x has shape (B, ...) with prod(rest) == 100.
    Returns (B, 1024) activations relu(fc3(...)) in `out_dtype` (bf16 default)."""
    w1, w2, w3, bcat = params
    B = x.shape[0]
    x2d = x.reshape(B, -1)                       # x.view(in_size, -1)
    assert x2d.shape[1] == IN_FEATURES, x2d.shape

    tm, b_pad, grid_n = _pick_tiling(B)

    # Single fused pad+cast: features 100 -> 128 (zero rows in w1 make this
    # exact) and rows B -> b_pad; bf16 halves the x HBM->VMEM traffic.
    x2d = jnp.pad(x2d.astype(jnp.bfloat16),
                  ((0, b_pad - B), (0, IN_PAD - IN_FEATURES)))

    out = pl.pallas_call(
        gnet_kernel,
        out_shape=jax.ShapeDtypeStruct((b_pad, H3), out_dtype),
        grid=(grid_n,),
        in_specs=[
            pl.BlockSpec((tm, IN_PAD), lambda i: (i, 0)),       # x tile (bf16)
            pl.BlockSpec((IN_PAD, H1), lambda i: (0, 0)),       # w1 (VMEM-resident)
            pl.BlockSpec((H1, H2), lambda i: (0, 0)),           # w2 (VMEM-resident)
            pl.BlockSpec((H2, H3), lambda i: (0, 0)),           # w3 (VMEM-resident)
            pl.BlockSpec((1, H1 + H2 + H3), lambda i: (0, 0)),  # biases (f32)
        ],
        out_specs=pl.BlockSpec((tm, H3), lambda i: (i, 0)),      # lane-dense output
        compiler_params=pltpu.CompilerParams(
            dimension_semantics=("parallel",)),
    )(x2d, w1, w2, w3, bcat)

    if b_pad != B:                                # only copy when padding happened
        out = out[:B]
    return out


def gnet_module_forward(x, params):
    """Exactly the PyTorch module: f32 output, final x.view(32, 32) (B == 1)."""
    out = gnet_forward(x, params, out_dtype=jnp.float32)
    return out.reshape(32, 32)


def init_params(key):
    """Deterministic synthetic init matching nn.Linear fan-in bounds.
    Weights stored (in, out) (so y = x @ W + b == torch's x @ W.T + b),
    cast to bf16; biases concatenated into one (1, 1536) f32 buffer."""
    k1, k2, k3, k4, k5, k6 = jax.random.split(key, 6)

    def lin(kw, kb, fan_in, fan_out):
        bound = 1.0 / jnp.sqrt(float(fan_in))
        w = jax.random.uniform(kw, (fan_in, fan_out), jnp.float32, -bound, bound)
        b = jax.random.uniform(kb, (fan_out,), jnp.float32, -bound, bound)
        return w, b

    w1, b1 = lin(k1, k2, IN_FEATURES, H1)
    w2, b2 = lin(k3, k4, H1, H2)
    w3, b3 = lin(k5, k6, H2, H3)

    # Pad fc1 weight rows 100..127 with zeros (matches zero-padded input).
    w1p = jnp.zeros((IN_PAD, H1), jnp.float32).at[:IN_FEATURES].set(w1)
    bcat = jnp.concatenate([b1, b2, b3]).reshape(1, H1 + H2 + H3)

    return (w1p.astype(jnp.bfloat16),
            w2.astype(jnp.bfloat16),
            w3.astype(jnp.bfloat16),
            bcat)


def gnet_ref(x, params):
    """Plain-JAX reference mirroring the kernel math (bf16 inputs/weights,
    f32 accumulation, f32 epilogue)."""
    w1, w2, w3, bcat = params
    b1 = bcat[:, 0:H1]
    b2 = bcat[:, H1:H1 + H2]
    b3 = bcat[:, H1 + H2:H1 + H2 + H3]
    x2d = x.reshape(x.shape[0], -1).astype(jnp.bfloat16)
    x2d = jnp.pad(x2d, ((0, 0), (0, IN_PAD - IN_FEATURES)))
    h = jnp.maximum(jnp.dot(x2d, w1, preferred_element_type=jnp.float32) + b1, 0.0)
    h = jnp.maximum(jnp.dot(h.astype(jnp.bfloat16), w2,
                            preferred_element_type=jnp.float32) + b2, 0.0)
    h = jnp.maximum(jnp.dot(h.astype(jnp.bfloat16), w3,
                            preferred_element_type=jnp.float32) + b3, 0.0)
    return h


if __name__ == "__main__":
    key = jax.random.PRNGKey(0)
    kx, kp = jax.random.split(key)
    params = init_params(kp)

    # Small batched path: B=96 -> two 48-row tiles over the "parallel" grid
    # (both v7x TensorCores busy, no row padding, no trailing slice); weights
    # stay VMEM-resident across both steps; bf16 output.
    xb = jax.random.normal(kx, (96, IN_FEATURES), jnp.float32)
    yb = jax.block_until_ready(gnet_forward(xb, params))
    assert yb.shape == (96, H3), yb.shape
    assert yb.dtype == jnp.bfloat16, yb.dtype
    refb = gnet_ref(xb, params)
    assert jnp.allclose(yb.astype(jnp.float32), refb, atol=3e-2, rtol=3e-2), (
        float(jnp.max(jnp.abs(yb.astype(jnp.float32) - refb))))

    # Module-faithful path: B == 1, f32 output, final view(32, 32) as in PyTorch.
    x1 = xb[:1]
    y1 = jax.block_until_ready(gnet_module_forward(x1, params))
    assert y1.shape == (32, 32), y1.shape
    assert y1.dtype == jnp.float32, y1.dtype
    assert jnp.allclose(y1, refb[:1].reshape(32, 32), atol=2e-2, rtol=2e-2)

    print("KERNEL_OK")
</pallas_src>

<mosaic_0001>
module attributes {stable_mosaic.version = 11 : i64} {
  func.func @gnet_kernel(%arg0: i32, %arg1: memref<48x128xbf16, #tpu.memory_space<vmem>>, %arg2: memref<128x256xbf16, #tpu.memory_space<vmem>>, %arg3: memref<256x256xbf16, #tpu.memory_space<vmem>>, %arg4: memref<256x1024xbf16, #tpu.memory_space<vmem>>, %arg5: memref<1x1536xf32, #tpu.memory_space<vmem>>, %arg6: memref<48x1024xbf16, #tpu.memory_space<vmem>>) attributes {dimension_semantics = [#tpu.dimension_semantics<parallel>], iteration_bounds = array<i64: 2>, scalar_prefetch = 0 : i64, scratch_operands = 0 : i64, tpu.core_type = #tpu.core_type<tc>, window_params = [{transform_indices = @transform_0, window_bounds = array<i64: 48, 128>}, {pipeline_mode = #tpu.pipeline_mode<synchronous>, transform_indices = @transform_1, window_bounds = array<i64: 128, 256>}, {pipeline_mode = #tpu.pipeline_mode<synchronous>, transform_indices = @transform_2, window_bounds = array<i64: 256, 256>}, {pipeline_mode = #tpu.pipeline_mode<synchronous>, transform_indices = @transform_3, window_bounds = array<i64: 256, 1024>}, {pipeline_mode = #tpu.pipeline_mode<synchronous>, transform_indices = @transform_4, window_bounds = array<i64: 1, 1536>}, {transform_indices = @transform_5, window_bounds = array<i64: 48, 1024>}]} {
    %c0 = arith.constant 0 : index
    %c0_0 = arith.constant 0 : index
    %0 = vector.load %arg5[%c0, %c0_0] : memref<1x1536xf32, #tpu.memory_space<vmem>>, vector<1x256xf32>
    %c0_1 = arith.constant 0 : index
    %c256 = arith.constant 256 : index
    %1 = vector.load %arg5[%c0_1, %c256] : memref<1x1536xf32, #tpu.memory_space<vmem>>, vector<1x256xf32>
    %c0_2 = arith.constant 0 : index
    %c512 = arith.constant 512 : index
    %2 = vector.load %arg5[%c0_2, %c512] : memref<1x1536xf32, #tpu.memory_space<vmem>>, vector<1x1024xf32>
    %c0_3 = arith.constant 0 : index
    %c0_4 = arith.constant 0 : index
    %3 = vector.load %arg1[%c0_3, %c0_4] : memref<48x128xbf16, #tpu.memory_space<vmem>>, vector<48x128xbf16>
    %c0_5 = arith.constant 0 : index
    %c0_6 = arith.constant 0 : index
    %4 = vector.load %arg2[%c0_5, %c0_6] : memref<128x256xbf16, #tpu.memory_space<vmem>>, vector<128x256xbf16>
    %cst = arith.constant dense<0.000000e+00> : vector<48x256xf32>
    %5 = tpu.matmul %3, %4, %cst {dimension_numbers = #tpu.dot_dimension_numbers<[1], [0], [0], [1], [0, 0, 1, 1], [], []>} : vector<48x128xbf16>, vector<128x256xbf16>, vector<48x256xf32> -> vector<48x256xf32>
    %6 = vector.broadcast %0 : vector<1x256xf32> to vector<48x256xf32>
    %7 = arith.addf %5, %6 : vector<48x256xf32>
    %cst_7 = arith.constant 0.000000e+00 : f32
    %8 = vector.broadcast %cst_7 : f32 to vector<48x256xf32>
    %9 = arith.maximumf %7, %8 : vector<48x256xf32>
    %10 = arith.truncf %9 : vector<48x256xf32> to vector<48x256xbf16>
    %c0_8 = arith.constant 0 : index
    %c0_9 = arith.constant 0 : index
    %11 = vector.load %arg3[%c0_8, %c0_9] : memref<256x256xbf16, #tpu.memory_space<vmem>>, vector<256x256xbf16>
    %cst_10 = arith.constant dense<0.000000e+00> : vector<48x256xf32>
    %12 = tpu.matmul %10, %11, %cst_10 {dimension_numbers = #tpu.dot_dimension_numbers<[1], [0], [0], [1], [0, 0, 1, 1], [], []>} : vector<48x256xbf16>, vector<256x256xbf16>, vector<48x256xf32> -> vector<48x256xf32>
    %13 = vector.broadcast %1 : vector<1x256xf32> to vector<48x256xf32>
    %14 = arith.addf %12, %13 : vector<48x256xf32>
    %cst_11 = arith.constant 0.000000e+00 : f32
    %15 = vector.broadcast %cst_11 : f32 to vector<48x256xf32>
    %16 = arith.maximumf %14, %15 : vector<48x256xf32>
    %17 = arith.truncf %16 : vector<48x256xf32> to vector<48x256xbf16>
    %c0_12 = arith.constant 0 : index
    %c0_13 = arith.constant 0 : index
    %18 = vector.load %arg4[%c0_12, %c0_13] : memref<256x1024xbf16, #tpu.memory_space<vmem>>, vector<256x1024xbf16>
    %cst_14 = arith.constant dense<0.000000e+00> : vector<48x1024xf32>
    %19 = tpu.matmul %17, %18, %cst_14 {dimension_numbers = #tpu.dot_dimension_numbers<[1], [0], [0], [1], [0, 0, 1, 1], [], []>} : vector<48x256xbf16>, vector<256x1024xbf16>, vector<48x1024xf32> -> vector<48x1024xf32>
    %20 = vector.broadcast %2 : vector<1x1024xf32> to vector<48x1024xf32>
    %21 = arith.addf %19, %20 : vector<48x1024xf32>
    %cst_15 = arith.constant 0.000000e+00 : f32
    %22 = vector.broadcast %cst_15 : f32 to vector<48x1024xf32>
    %23 = arith.maximumf %21, %22 : vector<48x1024xf32>
    %24 = arith.truncf %23 : vector<48x1024xf32> to vector<48x1024xbf16>
    %c0_16 = arith.constant 0 : index
    %c0_17 = arith.constant 0 : index
    %25 = vector.load %arg6[%c0_16, %c0_17] : memref<48x1024xbf16, #tpu.memory_space<vmem>>, vector<48x1024xbf16>
    tpu.vector_store %arg6[%c0_16, %c0_17], %24 {strides = array<i32>} : memref<48x1024xbf16, #tpu.memory_space<vmem>>, vector<48x1024xbf16>,
    return
  }
  func.func @transform_0(%arg0: i32) -> (i32, i32) {
    %c0_i32 = arith.constant 0 : i32
    %c0_i32_0 = arith.constant 0 : i32
    return %arg0, %c0_i32 : i32, i32
  }
  func.func @transform_1(%arg0: i32) -> (i32, i32) {
    %c0_i32 = arith.constant 0 : i32
    %c0_i32_0 = arith.constant 0 : i32
    %c0_i32_1 = arith.constant 0 : i32
    return %c0_i32, %c0_i32_0 : i32, i32
  }
  func.func @transform_2(%arg0: i32) -> (i32, i32) {
    %c0_i32 = arith.constant 0 : i32
    %c0_i32_0 = arith.constant 0 : i32
    %c0_i32_1 = arith.constant 0 : i32
    return %c0_i32, %c0_i32_0 : i32, i32
  }
  func.func @transform_3(%arg0: i32) -> (i32, i32) {
    %c0_i32 = arith.constant 0 : i32
    %c0_i32_0 = arith.constant 0 : i32
    %c0_i32_1 = arith.constant 0 : i32
    return %c0_i32, %c0_i32_0 : i32, i32
  }
  func.func @transform_4(%arg0: i32) -> (i32, i32) {
    %c0_i32 = arith.constant 0 : i32
    %c0_i32_0 = arith.constant 0 : i32
    %c0_i32_1 = arith.constant 0 : i32
    return %c0_i32, %c0_i32_0 : i32, i32
  }
  func.func @transform_5(%arg0: i32) -> (i32, i32) {
    %c0_i32 = arith.constant 0 : i32
    %c0_i32_0 = arith.constant 0 : i32
    return %arg0, %c0_i32 : i32, i32
  }
}

</mosaic_0001>

<llo_original>
// kernel: tpu_custom_call.1
$region0: #{tpu_custom_call.1}
  #allocation0 [shape = 'u32[]', space=smem, size = 0x4, offset = 0x4, fixed_abs, tag = 'smem constant byte address 0x4 - core index']
  #allocation1 [shape = 'u32[144,128]{1,0:T(1,128)}', space=vmem, size = 0x12000, scoped, tag = 'internal scratch']
  %s0 = inlined_call_operand.hbm [shape: bf16[96,128], index: 0, kind: input, shape index: {}]
  %s1 = inlined_call_operand.hbm [shape: bf16[128,256], index: 1, kind: input, shape index: {}]
  %s2 = inlined_call_operand.hbm [shape: bf16[256,256], index: 2, kind: input, shape index: {}]
  %s3 = inlined_call_operand.hbm [shape: bf16[256,1024], index: 3, kind: input, shape index: {}]
  %s4 = inlined_call_operand.vmem [shape: f32[1,1536], index: 4, kind: input, shape index: {}]
  %s5 = inlined_call_operand.hbm [shape: bf16[96,1024], index: 5, kind: output, shape index: {}]
  %s6 = sld [smem:[#allocation0]]
  $region69: #{tpu_custom_call.1} parent=0
    _
  %s8 = ssub.s32 1, %s6
  %s9 = scalar_select 0, %s8, %s6
  $region1: #{tpu_custom_call.1} parent=0
    #allocation2 [shape = 'u8[24576]{0}', space=vmem, size = 0x6000, scoped, tag = 'input window, operand 0']
    #allocation3 [shape = 's32[2]{0}', space=sflag, size = 0x8, scoped, tag = 'scoped memory for tpu_custom_call.1']
    #allocation4 [shape = 's32[2]{0}', space=sflag, size = 0x8, scoped, tag = 'scoped memory for tpu_custom_call.1']
    #allocation5 [shape = 'u8[65536]{0}', space=vmem, size = 0x10000, scoped, tag = 'input window, operand 1, single buffered']
    #allocation6 [shape = 's32[1]{0}', space=sflag, size = 0x4, scoped, tag = 'scoped memory for tpu_custom_call.1']
    #allocation7 [shape = 'u8[131072]{0}', space=vmem, size = 0x20000, scoped, tag = 'input window, operand 2, single buffered']
    #allocation8 [shape = 'u8[524288]{0}', space=vmem, size = 0x80000, scoped, tag = 'input window, operand 3, single buffered']
    #allocation9 [shape = 's32[1]{0}', space=sflag, size = 0x4, scoped, tag = 'scoped memory for tpu_custom_call.1']
    #allocation10 [shape = 'u8[196608]{0}', space=vmem, size = 0x30000, scoped, tag = 'output window, operand 0']
    %10 = vsyncpa [#allocation3], 0
    %s11 = scalar_lea.sflag [#allocation3], 1
    %12 = vsyncpa %s11, 0
    %13 = vsyncpa [#allocation6], 0
    %14 = vsyncpa [#allocation9], 0
    %15 = vsyncpa [#allocation4], 0
    %s16 = scalar_lea.sflag [#allocation4], 1
    %17 = vsyncpa %s16, 0
    loop: start=0, step=1, limit=4
    $region2: #{tpu_custom_call.1} parent=1 // loop_pre_header
      _
    $region3: #{tpu_custom_call.1} parent=1 // loop_header
      %s19 = sphi 0, %s23
      %p20 = scmp.ge.s32.totalorder %s19, 4
      %s29 = sphi 0, %s31
      %s32 = sphi 0, %s29
      %s33 = sphi 0, %s32
      %s49 = sphi 0, %s33
      %s53 = sphi 0, %s53
      %s55 = sphi 0, %s53
      %s56 = sphi 0, %s55
      %s70 = sphi 0, %s56
      %s74 = sphi 0, %s74
      %s76 = sphi 0, %s74
      %s77 = sphi 0, %s76
      %s91 = sphi 0, %s77
      %s95 = sphi 0, %s95
      %s97 = sphi 0, %s95
      %s98 = sphi 0, %s97
      %s112 = sphi 0, %s98
      %s116 = sphi 0, %s116
      %s118 = sphi 0, %s116
      %s119 = sphi 0, %s118
      %s133 = sphi 0, %s119
      %s139 = sphi 0, %s141
      %s142 = sphi 0, %s139
      %s143 = sphi 0, %s142
      %s159 = sphi 0, %s143
    $region4: #{tpu_custom_call.1} parent=1 // loop_header_branch
      %22 = sbr.rel (%p20) target = $region8
    $region5: #{tpu_custom_call.1} parent=1 // loop_body
      %s24 = ssub.s32 %s19, 1
      %s25 = ssub.s32 %s19, 2
      %s26 = sadd.s32 %s19, 1
      %s27 = ssub.s32 %s19, %s26
      %p28 = scmp.eq.s32.totalorder %s27, 0
      %s30 = sadd.s32 %s29, 1
      %s31 = scalar_select %p28, %s29, %s30
      %p34 = pneg %p28
      %p35 = scmp.eq.s32.totalorder %s19, 1
      %p36 = por %p34, %p35
      %p37 = scmp.ne.s32.totalorder %s29, %s32
      %p38 = scmp.eq.s32.totalorder %s19, 0
      %p39 = por %p37, %p38
      %p40 = scmp.ne.s32.totalorder %s29, %s32
      %p41 = scmp.eq.s32.totalorder %s24, 1
      %p42 = por %p40, %p41
      %p43 = scmp.ne.s32.totalorder %s32, %s33
      %p44 = scmp.eq.s32.totalorder %s24, 0
      %p45 = por %p43, %p44
      %p46 = scmp.ne.s32.totalorder %s32, %s33
      %p47 = scmp.eq.s32.totalorder %s25, 1
      %p48 = por %p46, %p47
      %p50 = scmp.ne.s32.totalorder %s33, %s49
      %p51 = scmp.eq.s32.totalorder %s25, 0
      %p52 = por %p50, %p51
      %s54 = sadd.s32 %s53, 1
      %p57 = scmp.eq.s32.totalorder %s19, 1
      %p58 = scmp.ne.s32.totalorder %s53, %s55
      %p59 = scmp.eq.s32.totalorder %s19, 0
      %p60 = por %p58, %p59
      %p61 = scmp.ne.s32.totalorder %s53, %s55
      %p62 = scmp.eq.s32.totalorder %s24, 1
      %p63 = por %p61, %p62
      %p64 = scmp.ne.s32.totalorder %s55, %s56
      %p65 = scmp.eq.s32.totalorder %s24, 0
      %p66 = por %p64, %p65
      %p67 = scmp.ne.s32.totalorder %s55, %s56
      %p68 = scmp.eq.s32.totalorder %s25, 1
      %p69 = por %p67, %p68
      %p71 = scmp.ne.s32.totalorder %s56, %s70
      %p72 = scmp.eq.s32.totalorder %s25, 0
      %p73 = por %p71, %p72
      %s75 = sadd.s32 %s74, 1
      %p78 = scmp.eq.s32.totalorder %s19, 1
      %p79 = scmp.ne.s32.totalorder %s74, %s76
      %p80 = scmp.eq.s32.totalorder %s19, 0
      %p81 = por %p79, %p80
      %p82 = scmp.ne.s32.totalorder %s74, %s76
      %p83 = scmp.eq.s32.totalorder %s24, 1
      %p84 = por %p82, %p83
      %p85 = scmp.ne.s32.totalorder %s76, %s77
      %p86 = scmp.eq.s32.totalorder %s24, 0
      %p87 = por %p85, %p86
      %p88 = scmp.ne.s32.totalorder %s76, %s77
      %p89 = scmp.eq.s32.totalorder %s25, 1
      %p90 = por %p88, %p89
      %p92 = scmp.ne.s32.totalorder %s77, %s91
      %p93 = scmp.eq.s32.totalorder %s25, 0
      %p94 = por %p92, %p93
      %s96 = sadd.s32 %s95, 1
      %p99 = scmp.eq.s32.totalorder %s19, 1
      %p100 = scmp.ne.s32.totalorder %s95, %s97
      %p101 = scmp.eq.s32.totalorder %s19, 0
      %p102 = por %p100, %p101
      %p103 = scmp.ne.s32.totalorder %s95, %s97
      %p104 = scmp.eq.s32.totalorder %s24, 1
      %p105 = por %p103, %p104
      %p106 = scmp.ne.s32.totalorder %s97, %s98
      %p107 = scmp.eq.s32.totalorder %s24, 0
      %p108 = por %p106, %p107
      %p109 = scmp.ne.s32.totalorder %s97, %s98
      %p110 = scmp.eq.s32.totalorder %s25, 1
      %p111 = por %p109, %p110
      %p113 = scmp.ne.s32.totalorder %s98, %s112
      %p114 = scmp.eq.s32.totalorder %s25, 0
      %p115 = por %p113, %p114
      %s117 = sadd.s32 %s116, 1
      %p120 = scmp.eq.s32.totalorder %s19, 1
      %p121 = scmp.ne.s32.totalorder %s116, %s118
      %p122 = scmp.eq.s32.totalorder %s19, 0
      %p123 = por %p121, %p122
      %p124 = scmp.ne.s32.totalorder %s116, %s118
      %p125 = scmp.eq.s32.totalorder %s24, 1
      %p126 = por %p124, %p125
      %p127 = scmp.ne.s32.totalorder %s118, %s119
      %p128 = scmp.eq.s32.totalorder %s24, 0
      %p129 = por %p127, %p128
      %p130 = scmp.ne.s32.totalorder %s118, %s119
      %p131 = scmp.eq.s32.totalorder %s25, 1
      %p132 = por %p130, %p131
      %p134 = scmp.ne.s32.totalorder %s119, %s133
      %p135 = scmp.eq.s32.totalorder %s25, 0
      %p136 = por %p134, %p135
      %s137 = ssub.s32 %s19, %s26
      %p138 = scmp.eq.s32.totalorder %s137, 0
      %s140 = sadd.s32 %s139, 1
      %s141 = scalar_select %p138, %s139, %s140
      %p144 = pneg %p138
      %p145 = scmp.eq.s32.totalorder %s19, 1
      %p146 = por %p144, %p145
      %p147 = scmp.ne.s32.totalorder %s139, %s142
      %p148 = scmp.eq.s32.totalorder %s19, 0
      %p149 = por %p147, %p148
      %p150 = scmp.ne.s32.totalorder %s139, %s142
      %p151 = scmp.eq.s32.totalorder %s24, 1
      %p152 = por %p150, %p151
      %p153 = scmp.ne.s32.totalorder %s142, %s143
      %p154 = scmp.eq.s32.totalorder %s24, 0
      %p155 = por %p153, %p154
      %p156 = scmp.ne.s32.totalorder %s142, %s143
      %p157 = scmp.eq.s32.totalorder %s25, 1
      %p158 = por %p156, %p157
      %p160 = scmp.ne.s32.totalorder %s143, %s159
      %p161 = scmp.eq.s32.totalorder %s25, 0
      %p162 = por %p160, %p161
      %p163 = scmp.le.s32.totalorder 1, %s19
      %p164 = scmp.lt.s32.totalorder %s19, 3
      %p165 = pnand %p163, %p164
      %p166 = pneg %p165
      // Predicated region
      $region9: #{tpu_custom_call.1} parent=5 // pred_check
        _
      $region10: #{tpu_custom_call.1} parent=5 // pred_check_branch
        %168 = sbr.rel (%p165) target = $region12
      $region11: #{tpu_custom_call.1} parent=5 // pred_region
        %s169 = ssub.s32 %s19, 1
        // Predicated region
        $region13: #{tpu_custom_call.1} parent=11 // pred_check
          %p170 = pneg %p66
        $region14: #{tpu_custom_call.1} parent=11 // pred_check_branch
          %172 = sbr.rel (%p170) target = $region16
        $region15: #{tpu_custom_call.1} parent=11 // pred_region
          %s174 = ssub.s32 2048, 2048
          %175 = vsyncadd [#allocation6], %s174
          %s176 = sshll.u32 [#allocation5], 4
          %s177 = int_to_ptr.vmem [resolvable:$true] %s176
          %182 = dma.hbm_to_vmem [thread:$0]  %s1, 2048, %s177, [#allocation6], 128, 128, 8
        $region16: #{tpu_custom_call.1} parent=11 // pred_fallthru
          _
        // Predicated region
        $region17: #{tpu_custom_call.1} parent=11 // pred_check
          %p183 = pneg %p87
        $region18: #{tpu_custom_call.1} parent=11 // pred_check_branch
          %185 = sbr.rel (%p183) target = $region20
        $region19: #{tpu_custom_call.1} parent=11 // pred_region
          %s187 = ssub.s32 4096, 4096
          %188 = vsyncadd [#allocation6], %s187
          %s189 = sshll.u32 [#allocation7], 4
          %s190 = int_to_ptr.vmem [resolvable:$true] %s189
          %195 = dma.hbm_to_vmem [thread:$0]  %s2, 4096, %s190, [#allocation6], 128, 128, 8
        $region20: #{tpu_custom_call.1} parent=11 // pred_fallthru
          _
        // Predicated region
        $region21: #{tpu_custom_call.1} parent=11 // pred_check
          %p196 = pneg %p108
        $region22: #{tpu_custom_call.1} parent=11 // pred_check_branch
          %198 = sbr.rel (%p196) target = $region24
        $region23: #{tpu_custom_call.1} parent=11 // pred_region
          %s200 = ssub.s32 16384, 16384
          %201 = vsyncadd [#allocation9], %s200
          %s202 = sshll.u32 [#allocation8], 4
          %s203 = int_to_ptr.vmem [resolvable:$true] %s202
          %208 = dma.hbm_to_vmem [thread:$0]  %s3, 16384, %s203, [#allocation9], 512, 512, 32
        $region24: #{tpu_custom_call.1} parent=11 // pred_fallthru
          _
        // Predicated region
        $region25: #{tpu_custom_call.1} parent=11 // pred_check
          %p209 = pneg %p129
        $region26: #{tpu_custom_call.1} parent=11 // pred_check_branch
          %211 = sbr.rel (%p209) target = $region28
        $region27: #{tpu_custom_call.1} parent=11 // pred_region
          _
        $region28: #{tpu_custom_call.1} parent=11 // pred_fallthru
          _
      $region12: #{tpu_custom_call.1} parent=5 // pred_fallthru
        _
      %p212 = scmp.lt.s32.totalorder %s19, 2
      // Predicated region
      $region29: #{tpu_custom_call.1} parent=5 // pred_check
        %p213 = pneg %p212
      $region30: #{tpu_custom_call.1} parent=5 // pred_check_branch
        %215 = sbr.rel (%p213) target = $region32
      $region31: #{tpu_custom_call.1} parent=5 // pred_region
        // Predicated region
        $region33: #{tpu_custom_call.1} parent=31 // pred_check
          %p216 = pneg %p39
        $region34: #{tpu_custom_call.1} parent=31 // pred_check_branch
          %218 = sbr.rel (%p216) target = $region36
        $region35: #{tpu_custom_call.1} parent=31 // pred_region
          %s219 = sand.u32 %s29, 1
          %s220 = scalar_lea.sflag [#allocation3], %s219
          %s221 = sand.u32 %s29, 1
          %s222 = smul.addr %s221, 24
          %s223 = scalar_lea.vmem [#allocation2], %s222
          %s224 = smul.u32 6, %s19
          %s226 = ssub.s32 384, 384
          %227 = vsyncadd %s220, %s226
          %s228 = smul.addr %s224, 64
          %s229 = scalar_lea.hbm %s0, %s228
          %s230 = sshll.u32 %s223, 4
          %s231 = int_to_ptr.vmem [resolvable:$true] %s230
          %236 = dma.hbm_to_vmem [thread:$0]  %s229, 384, %s231, %s220, 64, 64, 4
        $region36: #{tpu_custom_call.1} parent=31 // pred_fallthru
          _
      $region32: #{tpu_custom_call.1} parent=5 // pred_fallthru
        _
      %p237 = scmp.le.s32.totalorder 1, %s19
      %p238 = scmp.lt.s32.totalorder %s19, 3
      %p239 = pnand %p237, %p238
      %p240 = pneg %p239
      // Predicated region
      $region37: #{tpu_custom_call.1} parent=5 // pred_check
        _
      $region38: #{tpu_custom_call.1} parent=5 // pred_check_branch
        %242 = sbr.rel (%p239) target = $region40
      $region39: #{tpu_custom_call.1} parent=5 // pred_region
        %s243 = ssub.s32 %s19, 1
        %s244 = sand.u32 %s32, 1
        %s245 = scalar_lea.sflag [#allocation3], %s244
        %s246 = sand.u32 %s32, 1
        %s247 = smul.addr %s246, 24
        %s248 = scalar_lea.vmem [#allocation2], %s247
        // Predicated region
        $region41: #{tpu_custom_call.1} parent=39 // pred_check
          %p249 = pneg %p45
        $region42: #{tpu_custom_call.1} parent=39 // pred_check_branch
          %251 = sbr.rel (%p249) target = $region44
        $region43: #{tpu_custom_call.1} parent=39 // pred_region
          %252 = dma.done %s245, 384
        $region44: #{tpu_custom_call.1} parent=39 // pred_fallthru
          _
        // Predicated region
        $region45: #{tpu_custom_call.1} parent=39 // pred_check
          %p253 = pneg %p66
        $region46: #{tpu_custom_call.1} parent=39 // pred_check_branch
          %255 = sbr.rel (%p253) target = $region48
        $region47: #{tpu_custom_call.1} parent=39 // pred_region
          %256 = dma.done [#allocation6], 2048
        $region48: #{tpu_custom_call.1} parent=39 // pred_fallthru
          _
        // Predicated region
        $region49: #{tpu_custom_call.1} parent=39 // pred_check
          %p257 = pneg %p87
        $region50: #{tpu_custom_call.1} parent=39 // pred_check_branch
          %259 = sbr.rel (%p257) target = $region52
        $region51: #{tpu_custom_call.1} parent=39 // pred_region
          %260 = dma.done [#allocation6], 4096
        $region52: #{tpu_custom_call.1} parent=39 // pred_fallthru
          _
        // Predicated region
        $region53: #{tpu_custom_call.1} parent=39 // pred_check
          %p261 = pneg %p108
        $region54: #{tpu_custom_call.1} parent=39 // pred_check_branch
          %263 = sbr.rel (%p261) target = $region56
        $region55: #{tpu_custom_call.1} parent=39 // pred_region
          %264 = dma.done [#allocation9], 16384
        $region56: #{tpu_custom_call.1} parent=39 // pred_fallthru
          _
        %s265 = sand.u32 %s32, 1
        %s266 = scalar_lea.sflag [#allocation3], %s265
        %s267 = sand.u32 %s32, 1
        %s268 = smul.addr %s267, 24
        %s269 = scalar_lea.vmem [#allocation2], %s268
        %p270 = pneg %p45
        %p271 = pneg %p42
        %p272 = pneg %p66
        %p273 = pneg %p63
        %p274 = pneg %p87
        %p275 = pneg %p84
        %p276 = pneg %p108
        %p277 = pneg %p105
        %p278 = pneg %p129
        %p279 = pneg %p126
        %p280 = pneg %p155
        %p281 = pneg %p152
        %s282 = sand.u32 %s142, 1
        %s283 = scalar_lea.sflag [#allocation4], %s282
        %s284 = sand.u32 %s142, 1
        %s285 = smul.addr %s284, 192
        %s286 = scalar_lea.vmem [#allocation10], %s285
        %s287 = smul.u32 6, %s24
        %s288 = smul.u32 6, %s24
        %v290 = vld [vmem:[%s4] sm:$0x3]
        %v291 = vld [vmem:[%s4 + $0x2] sm:$0x3]
        %v292 = vld [vmem:[%s4 + $0x4] sm:$0xff]
        %v293 = vld [vmem:[%s248] sm:$0xf]
        %v294 = vld [vmem:[%s248 + $0x4] sm:$0xf]
        %v295 = vld [vmem:[%s248 + $0x8] sm:$0xf]
        %v296 = vld [vmem:[%s248 + $0xc] sm:$0xf]
        %v297 = vld [vmem:[%s248 + $0x10] sm:$0xf]
        %v298 = vld [vmem:[%s248 + $0x14] sm:$0xf]
        %v299 = vld [vmem:[#allocation5] sm:$0xff]
        %v300 = vld [vmem:[#allocation5 + $0x8] sm:$0xff]
        %v301 = vld [vmem:[#allocation5 + $0x10] sm:$0xff]
        %v302 = vld [vmem:[#allocation5 + $0x18] sm:$0xff]
        %v303 = vld [vmem:[#allocation5 + $0x20] sm:$0xff]
        %v304 = vld [vmem:[#allocation5 + $0x28] sm:$0xff]
        %v305 = vld [vmem:[#allocation5 + $0x30] sm:$0xff]
        %v306 = vld [vmem:[#allocation5 + $0x38] sm:$0xff]
        %v307 = vld [vmem:[#allocation5 + $0x40] sm:$0xff]
        %v308 = vld [vmem:[#allocation5 + $0x48] sm:$0xff]
        %v309 = vld [vmem:[#allocation5 + $0x50] sm:$0xff]
        %v310 = vld [vmem:[#allocation5 + $0x58] sm:$0xff]
        %v311 = vld [vmem:[#allocation5 + $0x60] sm:$0xff]
        %v312 = vld [vmem:[#allocation5 + $0x68] sm:$0xff]
        %v313 = vld [vmem:[#allocation5 + $0x70] sm:$0xff]
        %v314 = vld [vmem:[#allocation5 + $0x78] sm:$0xff]
        %v316 = vlaneseq
        %v317 = vshrl.u32 %v316, 7
        %v318 = vsub.s32 0, %v317
        %v319 = vrot.slane %v290, %v318
        %v320 = vlaneseq
        %v321 = vshrl.u32 %v320, 7
        %v322 = vsub.s32 1, %v321
        %v323 = vrot.slane %v290, %v322
        %v332 = vunpack.c.l.b16 %v293
        %v333 = vunpack.c.l.b16 %v294
        %v334 = vunpack.c.l.b16 %v295
        %v335 = vunpack.c.l.b16 %v296
        %v336 = vunpack.c.l.b16 %v297
        %v337 = vunpack.c.l.b16 %v298
        %v338 = vpack.c.b16 %v333, %v332
        %v339 = vpack.c.b16 %v335, %v334
        %v340 = vpack.c.b16 %v337, %v336
        %v360 = vunpack.c.l.b16 %v299
        %v361 = vunpack.c.h.b16 %v299
        %v362 = vunpack.c.l.b16 %v300
        %v363 = vunpack.c.h.b16 %v300
        %v364 = vunpack.c.l.b16 %v301
        %v365 = vunpack.c.h.b16 %v301
        %v366 = vunpack.c.l.b16 %v302
        %v367 = vunpack.c.h.b16 %v302
        %v368 = vunpack.c.l.b16 %v303
        %v369 = vunpack.c.h.b16 %v303
        %v370 = vunpack.c.l.b16 %v304
        %v371 = vunpack.c.h.b16 %v304
        %v372 = vunpack.c.l.b16 %v305
        %v373 = vunpack.c.h.b16 %v305
        %v374 = vunpack.c.l.b16 %v306
        %v375 = vunpack.c.h.b16 %v306
        %v376 = vunpack.c.l.b16 %v307
        %v377 = vunpack.c.h.b16 %v307
        %v378 = vunpack.c.l.b16 %v308
        %v379 = vunpack.c.h.b16 %v308
        %v380 = vunpack.c.l.b16 %v309
        %v381 = vunpack.c.h.b16 %v309
        %v382 = vunpack.c.l.b16 %v310
        %v383 = vunpack.c.h.b16 %v310
        %v384 = vunpack.c.l.b16 %v311
        %v385 = vunpack.c.h.b16 %v311
        %v386 = vunpack.c.l.b16 %v312
        %v387 = vunpack.c.h.b16 %v312
        %v388 = vunpack.c.l.b16 %v313
        %v389 = vunpack.c.h.b16 %v313
        %v390 = vunpack.c.l.b16 %v314
        %v391 = vunpack.c.h.b16 %v314
        %v392 = vpack.c.b16 %v362, %v360
        %v393 = vpack.c.b16 %v363, %v361
        %v394 = vpack.c.b16 %v366, %v364
        %v395 = vpack.c.b16 %v367, %v365
        %v396 = vpack.c.b16 %v370, %v368
        %v397 = vpack.c.b16 %v371, %v369
        %v398 = vpack.c.b16 %v374, %v372
        %v399 = vpack.c.b16 %v375, %v373
        %v400 = vpack.c.b16 %v378, %v376
        %v401 = vpack.c.b16 %v379, %v377
        %v402 = vpack.c.b16 %v382, %v380
        %v403 = vpack.c.b16 %v383, %v381
        %v404 = vpack.c.b16 %v386, %v384
        %v405 = vpack.c.b16 %v387, %v385
        %v406 = vpack.c.b16 %v390, %v388
        %v407 = vpack.c.b16 %v391, %v389
        %424 = vmatprep.subr.bf16.mxu0 %v393
        %425 = vmatpush1.bf16.msra.mxu0 %v392
        %426 = vmatprep.subr.bf16.mxu0 %v395
        %427 = vmatpush1.bf16.msra.mxu0 %v394
        %428 = vmatprep.subr.bf16.mxu0 %v397
        %429 = vmatpush1.bf16.msra.mxu0 %v396
        %430 = vmatprep.subr.bf16.mxu0 %v399
        %431 = vmatpush1.bf16.msra.mxu0 %v398
        %432 = vmatprep.subr.bf16.mxu0 %v401
        %433 = vmatpush1.bf16.msra.mxu0 %v400
        %434 = vmatprep.subr.bf16.mxu0 %v403
        %435 = vmatpush1.bf16.msra.mxu0 %v402
        %436 = vmatprep.subr.bf16.mxu0 %v405
        %437 = vmatpush1.bf16.msra.mxu0 %v404
        %438 = vmatprep.subr.bf16.mxu0 %v407
        %439 = vmatpush1.bf16.msra.mxu0 %v406
        %440 = vmatprep.subr.bf16.mxu0 0
        %441 = vmatpush1.bf16.msra.mxu0 0
        %442 = vmatprep.subr.bf16.mxu0 0
        %443 = vmatpush1.bf16.msra.mxu0 0
        %444 = vmatprep.subr.bf16.mxu0 0
        %445 = vmatpush1.bf16.msra.mxu0 0
        %446 = vmatprep.subr.bf16.mxu0 0
        %447 = vmatpush1.bf16.msra.mxu0 0
        %448 = vmatprep.subr.bf16.mxu0 0
        %449 = vmatpush1.bf16.msra.mxu0 0
        %450 = vmatprep.subr.bf16.mxu0 0
        %451 = vmatpush1.bf16.msra.mxu0 0
        %452 = vmatprep.subr.bf16.mxu0 0
        %453 = vmatpush1.bf16.msra.mxu0 0
        %454 = vmatprep.subr.bf16.mxu0 0
        %455 = vmatpush1.bf16.msra.mxu0 0
        %456 = vmatprep.mubr.bf16.mxu0 0
        %457 = vmatmul.mubr.bf16.gmra.mrb[0].mxu0 %v338
        %v458 = vpop.f32.mrb[0].mxu0
        %v459 = vadd.f32 %v319, %v458
        %v460 = vpop.f32.mrb[0].mxu0
        %v461 = vadd.f32 %v323, %v460
        %v462 = vpop.f32.mrb[0].mxu0
        %v463 = vadd.f32 %v319, %v462
        %v464 = vpop.f32.mrb[0].mxu0
        %v465 = vadd.f32 %v323, %v464
        %466 = vmatprep.mubr.bf16.mxu0 0
        %467 = vmatmul.mubr.bf16.gmra.mrb[0].mxu0 %v339
        %v468 = vpop.f32.mrb[0].mxu0
        %v469 = vadd.f32 %v319, %v468
        %v470 = vpop.f32.mrb[0].mxu0
        %v471 = vadd.f32 %v323, %v470
        %v472 = vpop.f32.mrb[0].mxu0
        %v473 = vadd.f32 %v319, %v472
        %v474 = vpop.f32.mrb[0].mxu0
        %v475 = vadd.f32 %v323, %v474
        %476 = vmatprep.mubr.bf16.mxu0 0
        %477 = vmatmul.mubr.bf16.gmra.mrb[0].mxu0 %v340
        %v478 = vpop.f32.mrb[0].mxu0
        %v479 = vadd.f32 %v319, %v478
        %v480 = vpop.f32.mrb[0].mxu0
        %v481 = vadd.f32 %v323, %v480
        %v482 = vpop.f32.mrb[0].mxu0
        %v483 = vadd.f32 %v319, %v482
        %v484 = vpop.f32.mrb[0].mxu0
        %v485 = vadd.f32 %v323, %v484
        %486 = vdwg.mxu0
        %v487 = vmax.f32 %v459, 0.0
        %v488 = vmax.f32 %v461, 0.0
        %v489 = vmax.f32 %v463, 0.0
        %v490 = vmax.f32 %v465, 0.0
        %v491 = vmax.f32 %v469, 0.0
        %v492 = vmax.f32 %v471, 0.0
        %v493 = vmax.f32 %v473, 0.0
        %v494 = vmax.f32 %v475, 0.0
        %v495 = vmax.f32 %v479, 0.0
        %v496 = vmax.f32 %v481, 0.0
        %v497 = vmax.f32 %v483, 0.0
        %v498 = vmax.f32 %v485, 0.0
        %v499 = vpack.c.bf16 %v489, %v487
        %v500 = vpack.c.bf16 %v490, %v488
        %v501 = vpack.c.bf16 %v493, %v491
        %v502 = vpack.c.bf16 %v494, %v492
        %v503 = vpack.c.bf16 %v497, %v495
        %v504 = vpack.c.bf16 %v498, %v496
        %v505 = vld [vmem:[#allocation7] sm:$0xff]
        %v506 = vld [vmem:[#allocation7 + $0x8] sm:$0xff]
        %v507 = vld [vmem:[#allocation7 + $0x10] sm:$0xff]
        %v508 = vld [vmem:[#allocation7 + $0x18] sm:$0xff]
        %v509 = vld [vmem:[#allocation7 + $0x20] sm:$0xff]
        %v510 = vld [vmem:[#allocation7 + $0x28] sm:$0xff]
        %v511 = vld [vmem:[#allocation7 + $0x30] sm:$0xff]
        %v512 = vld [vmem:[#allocation7 + $0x38] sm:$0xff]
        %v513 = vld [vmem:[#allocation7 + $0x40] sm:$0xff]
        %v514 = vld [vmem:[#allocation7 + $0x48] sm:$0xff]
        %v515 = vld [vmem:[#allocation7 + $0x50] sm:$0xff]
        %v516 = vld [vmem:[#allocation7 + $0x58] sm:$0xff]
        %v517 = vld [vmem:[#allocation7 + $0x60] sm:$0xff]
        %v518 = vld [vmem:[#allocation7 + $0x68] sm:$0xff]
        %v519 = vld [vmem:[#allocation7 + $0x70] sm:$0xff]
        %v520 = vld [vmem:[#allocation7 + $0x78] sm:$0xff]
        %v521 = vld [vmem:[#allocation7 + $0x80] sm:$0xff]
        %v522 = vld [vmem:[#allocation7 + $0x88] sm:$0xff]
        %v523 = vld [vmem:[#allocation7 + $0x90] sm:$0xff]
        %v524 = vld [vmem:[#allocation7 + $0x98] sm:$0xff]
        %v525 = vld [vmem:[#allocation7 + $0xa0] sm:$0xff]
        %v526 = vld [vmem:[#allocation7 + $0xa8] sm:$0xff]
        %v527 = vld [vmem:[#allocation7 + $0xb0] sm:$0xff]
        %v528 = vld [vmem:[#allocation7 + $0xb8] sm:$0xff]
        %v529 = vld [vmem:[#allocation7 + $0xc0] sm:$0xff]
        %v530 = vld [vmem:[#allocation7 + $0xc8] sm:$0xff]
        %v531 = vld [vmem:[#allocation7 + $0xd0] sm:$0xff]
        %v532 = vld [vmem:[#allocation7 + $0xd8] sm:$0xff]
        %v533 = vld [vmem:[#allocation7 + $0xe0] sm:$0xff]
        %v534 = vld [vmem:[#allocation7 + $0xe8] sm:$0xff]
        %v535 = vld [vmem:[#allocation7 + $0xf0] sm:$0xff]
        %v536 = vld [vmem:[#allocation7 + $0xf8] sm:$0xff]
        %v538 = vlaneseq
        %v539 = vshrl.u32 %v538, 7
        %v540 = vsub.s32 0, %v539
        %v541 = vrot.slane %v291, %v540
        %v542 = vlaneseq
        %v543 = vshrl.u32 %v542, 7
        %v544 = vsub.s32 1, %v543
        %v545 = vrot.slane %v291, %v544
        %v580 = vunpack.c.l.b16 %v505
        %v581 = vunpack.c.h.b16 %v505
        %v582 = vunpack.c.l.b16 %v506
        %v583 = vunpack.c.h.b16 %v506
        %v584 = vunpack.c.l.b16 %v507
        %v585 = vunpack.c.h.b16 %v507
        %v586 = vunpack.c.l.b16 %v508
        %v587 = vunpack.c.h.b16 %v508
        %v588 = vunpack.c.l.b16 %v509
        %v589 = vunpack.c.h.b16 %v509
        %v590 = vunpack.c.l.b16 %v510
        %v591 = vunpack.c.h.b16 %v510
        %v592 = vunpack.c.l.b16 %v511
        %v593 = vunpack.c.h.b16 %v511
        %v594 = vunpack.c.l.b16 %v512
        %v595 = vunpack.c.h.b16 %v512
        %v596 = vunpack.c.l.b16 %v513
        %v597 = vunpack.c.h.b16 %v513
        %v598 = vunpack.c.l.b16 %v514
        %v599 = vunpack.c.h.b16 %v514
        %v600 = vunpack.c.l.b16 %v515
        %v601 = vunpack.c.h.b16 %v515
        %v602 = vunpack.c.l.b16 %v516
        %v603 = vunpack.c.h.b16 %v516
        %v604 = vunpack.c.l.b16 %v517
        %v605 = vunpack.c.h.b16 %v517
        %v606 = vunpack.c.l.b16 %v518
        %v607 = vunpack.c.h.b16 %v518
        %v608 = vunpack.c.l.b16 %v519
        %v609 = vunpack.c.h.b16 %v519
        %v610 = vunpack.c.l.b16 %v520
        %v611 = vunpack.c.h.b16 %v520
        %v612 = vunpack.c.l.b16 %v521
        %v613 = vunpack.c.h.b16 %v521
        %v614 = vunpack.c.l.b16 %v522
        %v615 = vunpack.c.h.b16 %v522
        %v616 = vunpack.c.l.b16 %v523
        %v617 = vunpack.c.h.b16 %v523
        %v618 = vunpack.c.l.b16 %v524
        %v619 = vunpack.c.h.b16 %v524
        %v620 = vunpack.c.l.b16 %v525
        %v621 = vunpack.c.h.b16 %v525
        %v622 = vunpack.c.l.b16 %v526
        %v623 = vunpack.c.h.b16 %v526
        %v624 = vunpack.c.l.b16 %v527
        %v625 = vunpack.c.h.b16 %v527
        %v626 = vunpack.c.l.b16 %v528
        %v627 = vunpack.c.h.b16 %v528
        %v628 = vunpack.c.l.b16 %v529
        %v629 = vunpack.c.h.b16 %v529
        %v630 = vunpack.c.l.b16 %v530
        %v631 = vunpack.c.h.b16 %v530
        %v632 = vunpack.c.l.b16 %v531
        %v633 = vunpack.c.h.b16 %v531
        %v634 = vunpack.c.l.b16 %v532
        %v635 = vunpack.c.h.b16 %v532
        %v636 = vunpack.c.l.b16 %v533
        %v637 = vunpack.c.h.b16 %v533
        %v638 = vunpack.c.l.b16 %v534
        %v639 = vunpack.c.h.b16 %v534
        %v640 = vunpack.c.l.b16 %v535
        %v641 = vunpack.c.h.b16 %v535
        %v642 = vunpack.c.l.b16 %v536
        %v643 = vunpack.c.h.b16 %v536
        %v644 = vpack.c.b16 %v582, %v580
        %v645 = vpack.c.b16 %v583, %v581
        %v646 = vpack.c.b16 %v586, %v584
        %v647 = vpack.c.b16 %v587, %v585
        %v648 = vpack.c.b16 %v590, %v588
        %v649 = vpack.c.b16 %v591, %v589
        %v650 = vpack.c.b16 %v594, %v592
        %v651 = vpack.c.b16 %v595, %v593
        %v652 = vpack.c.b16 %v598, %v596
        %v653 = vpack.c.b16 %v599, %v597
        %v654 = vpack.c.b16 %v602, %v600
        %v655 = vpack.c.b16 %v603, %v601
        %v656 = vpack.c.b16 %v606, %v604
        %v657 = vpack.c.b16 %v607, %v605
        %v658 = vpack.c.b16 %v610, %v608
        %v659 = vpack.c.b16 %v611, %v609
        %v660 = vpack.c.b16 %v614, %v612
        %v661 = vpack.c.b16 %v615, %v613
        %v662 = vpack.c.b16 %v618, %v616
        %v663 = vpack.c.b16 %v619, %v617
        %v664 = vpack.c.b16 %v622, %v620
        %v665 = vpack.c.b16 %v623, %v621
        %v666 = vpack.c.b16 %v626, %v624
        %v667 = vpack.c.b16 %v627, %v625
        %v668 = vpack.c.b16 %v630, %v628
        %v669 = vpack.c.b16 %v631, %v629
        %v670 = vpack.c.b16 %v634, %v632
        %v671 = vpack.c.b16 %v635, %v633
        %v672 = vpack.c.b16 %v638, %v636
        %v673 = vpack.c.b16 %v639, %v637
        %v674 = vpack.c.b16 %v642, %v640
        %v675 = vpack.c.b16 %v643, %v641
        %708 = vmatprep.subr.bf16.mxu0 %v645
        %709 = vmatpush1.bf16.msra.mxu0 %v644
        %710 = vmatprep.subr.bf16.mxu0 %v647
        %711 = vmatpush1.bf16.msra.mxu0 %v646
        %712 = vmatprep.subr.bf16.mxu0 %v649
        %713 = vmatpush1.bf16.msra.mxu0 %v648
        %714 = vmatprep.subr.bf16.mxu0 %v651
        %715 = vmatpush1.bf16.msra.mxu0 %v650
        %716 = vmatprep.subr.bf16.mxu0 %v653
        %717 = vmatpush1.bf16.msra.mxu0 %v652
        %718 = vmatprep.subr.bf16.mxu0 %v655
        %719 = vmatpush1.bf16.msra.mxu0 %v654
        %720 = vmatprep.subr.bf16.mxu0 %v657
        %721 = vmatpush1.bf16.msra.mxu0 %v656
        %722 = vmatprep.subr.bf16.mxu0 %v659
        %723 = vmatpush1.bf16.msra.mxu0 %v658
        %724 = vmatprep.subr.bf16.mxu0 %v661
        %725 = vmatpush1.bf16.msra.mxu0 %v660
        %726 = vmatprep.subr.bf16.mxu0 %v663
        %727 = vmatpush1.bf16.msra.mxu0 %v662
        %728 = vmatprep.subr.bf16.mxu0 %v665
        %729 = vmatpush1.bf16.msra.mxu0 %v664
        %730 = vmatprep.subr.bf16.mxu0 %v667
        %731 = vmatpush1.bf16.msra.mxu0 %v666
        %732 = vmatprep.subr.bf16.mxu0 %v669
        %733 = vmatpush1.bf16.msra.mxu0 %v668
        %734 = vmatprep.subr.bf16.mxu0 %v671
        %735 = vmatpush1.bf16.msra.mxu0 %v670
        %736 = vmatprep.subr.bf16.mxu0 %v673
        %737 = vmatpush1.bf16.msra.mxu0 %v672
        %738 = vmatprep.subr.bf16.mxu0 %v675
        %739 = vmatpush1.bf16.msra.mxu0 %v674
        %740 = vmatprep.mubr.bf16.mxu0 %v500
        %741 = vmatmul.mubr.bf16.gmra.mrb[0].mxu0 %v499
        %v742 = vpop.f32.mrb[0].mxu0
        %v743 = vadd.f32 %v541, %v742
        %v744 = vpop.f32.mrb[0].mxu0
        %v745 = vadd.f32 %v545, %v744
        %v746 = vpop.f32.mrb[0].mxu0
        %v747 = vadd.f32 %v541, %v746
        %v748 = vpop.f32.mrb[0].mxu0
        %v749 = vadd.f32 %v545, %v748
        %750 = vmatprep.mubr.bf16.mxu0 %v502
        %751 = vmatmul.mubr.bf16.gmra.mrb[0].mxu0 %v501
        %v752 = vpop.f32.mrb[0].mxu0
        %v753 = vadd.f32 %v541, %v752
        %v754 = vpop.f32.mrb[0].mxu0
        %v755 = vadd.f32 %v545, %v754
        %v756 = vpop.f32.mrb[0].mxu0
        %v757 = vadd.f32 %v541, %v756
        %v758 = vpop.f32.mrb[0].mxu0
        %v759 = vadd.f32 %v545, %v758
        %760 = vmatprep.mubr.bf16.mxu0 %v504
        %761 = vmatmul.mubr.bf16.gmra.mrb[0].mxu0 %v503
        %v762 = vpop.f32.mrb[0].mxu0
        %v763 = vadd.f32 %v541, %v762
        %v764 = vpop.f32.mrb[0].mxu0
        %v765 = vadd.f32 %v545, %v764
        %v766 = vpop.f32.mrb[0].mxu0
        %v767 = vadd.f32 %v541, %v766
        %v768 = vpop.f32.mrb[0].mxu0
        %v769 = vadd.f32 %v545, %v768
        %770 = vdwg.mxu0
        %v771 = vmax.f32 %v743, 0.0
        %v772 = vmax.f32 %v745, 0.0
        %v773 = vmax.f32 %v747, 0.0
        %v774 = vmax.f32 %v749, 0.0
        %v775 = vmax.f32 %v753, 0.0
        %v776 = vmax.f32 %v755, 0.0
        %v777 = vmax.f32 %v757, 0.0
        %v778 = vmax.f32 %v759, 0.0
        %v779 = vmax.f32 %v763, 0.0
        %v780 = vmax.f32 %v765, 0.0
        %v781 = vmax.f32 %v767, 0.0
        %v782 = vmax.f32 %v769, 0.0
        %v783 = vpack.c.bf16 %v773, %v771
        %v784 = vpack.c.bf16 %v774, %v772
        %v785 = vpack.c.bf16 %v777, %v775
        %v786 = vpack.c.bf16 %v778, %v776
        %v787 = vpack.c.bf16 %v781, %v779
        %v788 = vpack.c.bf16 %v782, %v780
        %v789 = vld [vmem:[#allocation8] sm:$0xff]
        %v790 = vld [vmem:[#allocation8 + $0x8] sm:$0xff]
        %v791 = vld [vmem:[#allocation8 + $0x10] sm:$0xff]
        %v792 = vld [vmem:[#allocation8 + $0x18] sm:$0xff]
        %v793 = vld [vmem:[#allocation8 + $0x20] sm:$0xff]
        %v794 = vld [vmem:[#allocation8 + $0x28] sm:$0xff]
        %v795 = vld [vmem:[#allocation8 + $0x30] sm:$0xff]
        %v796 = vld [vmem:[#allocation8 + $0x38] sm:$0xff]
        %v797 = vld [vmem:[#allocation8 + $0x40] sm:$0xff]
        %v798 = vld [vmem:[#allocation8 + $0x48] sm:$0xff]
        %v799 = vld [vmem:[#allocation8 + $0x50] sm:$0xff]
        %v800 = vld [vmem:[#allocation8 + $0x58] sm:$0xff]
        %v801 = vld [vmem:[#allocation8 + $0x60] sm:$0xff]
        %v802 = vld [vmem:[#allocation8 + $0x68] sm:$0xff]
        %v803 = vld [vmem:[#allocation8 + $0x70] sm:$0xff]
        %v804 = vld [vmem:[#allocation8 + $0x78] sm:$0xff]
        %v805 = vld [vmem:[#allocation8 + $0x80] sm:$0xff]
        %v806 = vld [vmem:[#allocation8 + $0x88] sm:$0xff]
        %v807 = vld [vmem:[#allocation8 + $0x90] sm:$0xff]
        %v808 = vld [vmem:[#allocation8 + $0x98] sm:$0xff]
        %v809 = vld [vmem:[#allocation8 + $0xa0] sm:$0xff]
        %v810 = vld [vmem:[#allocation8 + $0xa8] sm:$0xff]
        %v811 = vld [vmem:[#allocation8 + $0xb0] sm:$0xff]
        %v812 = vld [vmem:[#allocation8 + $0xb8] sm:$0xff]
        %v813 = vld [vmem:[#allocation8 + $0xc0] sm:$0xff]
        %v814 = vld [vmem:[#allocation8 + $0xc8] sm:$0xff]
        %v815 = vld [vmem:[#allocation8 + $0xd0] sm:$0xff]
        %v816 = vld [vmem:[#allocation8 + $0xd8] sm:$0xff]
        %v817 = vld [vmem:[#allocation8 + $0xe0] sm:$0xff]
        %v818 = vld [vmem:[#allocation8 + $0xe8] sm:$0xff]
        %v819 = vld [vmem:[#allocation8 + $0xf0] sm:$0xff]
        %v820 = vld [vmem:[#allocation8 + $0xf8] sm:$0xff]
        %v821 = vld [vmem:[#allocation8 + $0x100] sm:$0xff]
        %v822 = vld [vmem:[#allocation8 + $0x108] sm:$0xff]
        %v823 = vld [vmem:[#allocation8 + $0x110] sm:$0xff]
        %v824 = vld [vmem:[#allocation8 + $0x118] sm:$0xff]
        %v825 = vld [vmem:[#allocation8 + $0x120] sm:$0xff]
        %v826 = vld [vmem:[#allocation8 + $0x128] sm:$0xff]
        %v827 = vld [vmem:[#allocation8 + $0x130] sm:$0xff]
        %v828 = vld [vmem:[#allocation8 + $0x138] sm:$0xff]
        %v829 = vld [vmem:[#allocation8 + $0x140] sm:$0xff]
        %v830 = vld [vmem:[#allocation8 + $0x148] sm:$0xff]
        %v831 = vld [vmem:[#allocation8 + $0x150] sm:$0xff]
        %v832 = vld [vmem:[#allocation8 + $0x158] sm:$0xff]
        %v833 = vld [vmem:[#allocation8 + $0x160] sm:$0xff]
        %v834 = vld [vmem:[#allocation8 + $0x168] sm:$0xff]
        %v835 = vld [vmem:[#allocation8 + $0x170] sm:$0xff]
        %v836 = vld [vmem:[#allocation8 + $0x178] sm:$0xff]
        %v837 = vld [vmem:[#allocation8 + $0x180] sm:$0xff]
        %v838 = vld [vmem:[#allocation8 + $0x188] sm:$0xff]
        %v839 = vld [vmem:[#allocation8 + $0x190] sm:$0xff]
        %v840 = vld [vmem:[#allocation8 + $0x198] sm:$0xff]
        %v841 = vld [vmem:[#allocation8 + $0x1a0] sm:$0xff]
        %v842 = vld [vmem:[#allocation8 + $0x1a8] sm:$0xff]
        %v843 = vld [vmem:[#allocation8 + $0x1b0] sm:$0xff]
        %v844 = vld [vmem:[#allocation8 + $0x1b8] sm:$0xff]
        %v845 = vld [vmem:[#allocation8 + $0x1c0] sm:$0xff]
        %v846 = vld [vmem:[#allocation8 + $0x1c8] sm:$0xff]
        %v847 = vld [vmem:[#allocation8 + $0x1d0] sm:$0xff]
        %v848 = vld [vmem:[#allocation8 + $0x1d8] sm:$0xff]
        %v849 = vld [vmem:[#allocation8 + $0x1e0] sm:$0xff]
        %v850 = vld [vmem:[#allocation8 + $0x1e8] sm:$0xff]
        %v851 = vld [vmem:[#allocation8 + $0x1f0] sm:$0xff]
        %v852 = vld [vmem:[#allocation8 + $0x1f8] sm:$0xff]
        %v853 = vld [vmem:[#allocation8 + $0x200] sm:$0xff]
        %v854 = vld [vmem:[#allocation8 + $0x208] sm:$0xff]
        %v855 = vld [vmem:[#allocation8 + $0x210] sm:$0xff]
        %v856 = vld [vmem:[#allocation8 + $0x218] sm:$0xff]
        %v857 = vld [vmem:[#allocation8 + $0x220] sm:$0xff]
        %v858 = vld [vmem:[#allocation8 + $0x228] sm:$0xff]
        %v859 = vld [vmem:[#allocation8 + $0x230] sm:$0xff]
        %v860 = vld [vmem:[#allocation8 + $0x238] sm:$0xff]
        %v861 = vld [vmem:[#allocation8 + $0x240] sm:$0xff]
        %v862 = vld [vmem:[#allocation8 + $0x248] sm:$0xff]
        %v863 = vld [vmem:[#allocation8 + $0x250] sm:$0xff]
        %v864 = vld [vmem:[#allocation8 + $0x258] sm:$0xff]
        %v865 = vld [vmem:[#allocation8 + $0x260] sm:$0xff]
        %v866 = vld [vmem:[#allocation8 + $0x268] sm:$0xff]
        %v867 = vld [vmem:[#allocation8 + $0x270] sm:$0xff]
        %v868 = vld [vmem:[#allocation8 + $0x278] sm:$0xff]
        %v869 = vld [vmem:[#allocation8 + $0x280] sm:$0xff]
        %v870 = vld [vmem:[#allocation8 + $0x288] sm:$0xff]
        %v871 = vld [vmem:[#allocation8 + $0x290] sm:$0xff]
        %v872 = vld [vmem:[#allocation8 + $0x298] sm:$0xff]
        %v873 = vld [vmem:[#allocation8 + $0x2a0] sm:$0xff]
        %v874 = vld [vmem:[#allocation8 + $0x2a8] sm:$0xff]
        %v875 = vld [vmem:[#allocation8 + $0x2b0] sm:$0xff]
        %v876 = vld [vmem:[#allocation8 + $0x2b8] sm:$0xff]
        %v877 = vld [vmem:[#allocation8 + $0x2c0] sm:$0xff]
        %v878 = vld [vmem:[#allocation8 + $0x2c8] sm:$0xff]
        %v879 = vld [vmem:[#allocation8 + $0x2d0] sm:$0xff]
        %v880 = vld [vmem:[#allocation8 + $0x2d8] sm:$0xff]
        %v881 = vld [vmem:[#allocation8 + $0x2e0] sm:$0xff]
        %v882 = vld [vmem:[#allocation8 + $0x2e8] sm:$0xff]
        %v883 = vld [vmem:[#allocation8 + $0x2f0] sm:$0xff]
        %v884 = vld [vmem:[#allocation8 + $0x2f8] sm:$0xff]
        %v885 = vld [vmem:[#allocation8 + $0x300] sm:$0xff]
        %v886 = vld [vmem:[#allocation8 + $0x308] sm:$0xff]
        %v887 = vld [vmem:[#allocation8 + $0x310] sm:$0xff]
        %v888 = vld [vmem:[#allocation8 + $0x318] sm:$0xff]
        %v889 = vld [vmem:[#allocation8 + $0x320] sm:$0xff]
        %v890 = vld [vmem:[#allocation8 + $0x328] sm:$0xff]
        %v891 = vld [vmem:[#allocation8 + $0x330] sm:$0xff]
        %v892 = vld [vmem:[#allocation8 + $0x338] sm:$0xff]
        %v893 = vld [vmem:[#allocation8 + $0x340] sm:$0xff]
        %v894 = vld [vmem:[#allocation8 + $0x348] sm:$0xff]
        %v895 = vld [vmem:[#allocation8 + $0x350] sm:$0xff]
        %v896 = vld [vmem:[#allocation8 + $0x358] sm:$0xff]
        %v897 = vld [vmem:[#allocation8 + $0x360] sm:$0xff]
        %v898 = vld [vmem:[#allocation8 + $0x368] sm:$0xff]
        %v899 = vld [vmem:[#allocation8 + $0x370] sm:$0xff]
        %v900 = vld [vmem:[#allocation8 + $0x378] sm:$0xff]
        %v901 = vld [vmem:[#allocation8 + $0x380] sm:$0xff]
        %v902 = vld [vmem:[#allocation8 + $0x388] sm:$0xff]
        %v903 = vld [vmem:[#allocation8 + $0x390] sm:$0xff]
        %v904 = vld [vmem:[#allocation8 + $0x398] sm:$0xff]
        %v905 = vld [vmem:[#allocation8 + $0x3a0] sm:$0xff]
        %v906 = vld [vmem:[#allocation8 + $0x3a8] sm:$0xff]
        %v907 = vld [vmem:[#allocation8 + $0x3b0] sm:$0xff]
        %v908 = vld [vmem:[#allocation8 + $0x3b8] sm:$0xff]
        %v909 = vld [vmem:[#allocation8 + $0x3c0] sm:$0xff]
        %v910 = vld [vmem:[#allocation8 + $0x3c8] sm:$0xff]
        %v911 = vld [vmem:[#allocation8 + $0x3d0] sm:$0xff]
        %v912 = vld [vmem:[#allocation8 + $0x3d8] sm:$0xff]
        %v913 = vld [vmem:[#allocation8 + $0x3e0] sm:$0xff]
        %v914 = vld [vmem:[#allocation8 + $0x3e8] sm:$0xff]
        %v915 = vld [vmem:[#allocation8 + $0x3f0] sm:$0xff]
        %v916 = vld [vmem:[#allocation8 + $0x3f8] sm:$0xff]
        %v918 = vlaneseq
        %v919 = vshrl.u32 %v918, 7
        %v920 = vsub.s32 0, %v919
        %v921 = vrot.slane %v292, %v920
        %v922 = vlaneseq
        %v923 = vshrl.u32 %v922, 7
        %v924 = vsub.s32 1, %v923
        %v925 = vrot.slane %v292, %v924
        %v926 = vlaneseq
        %v927 = vshrl.u32 %v926, 7
        %v928 = vsub.s32 2, %v927
        %v929 = vrot.slane %v292, %v928
        %v930 = vlaneseq
        %v931 = vshrl.u32 %v930, 7
        %v932 = vsub.s32 3, %v931
        %v933 = vrot.slane %v292, %v932
        %v934 = vlaneseq
        %v935 = vshrl.u32 %v934, 7
        %v936 = vsub.s32 4, %v935
        %v937 = vrot.slane %v292, %v936
        %v938 = vlaneseq
        %v939 = vshrl.u32 %v938, 7
        %v940 = vsub.s32 5, %v939
        %v941 = vrot.slane %v292, %v940
        %v942 = vlaneseq
        %v943 = vshrl.u32 %v942, 7
        %v944 = vsub.s32 6, %v943
        %v945 = vrot.slane %v292, %v944
        %v946 = vlaneseq
        %v947 = vshrl.u32 %v946, 7
        %v948 = vsub.s32 7, %v947
        %v949 = vrot.slane %v292, %v948
        %v1086 = vunpack.c.l.b16 %v789
        %v1087 = vunpack.c.h.b16 %v789
        %v1088 = vunpack.c.l.b16 %v790
        %v1089 = vunpack.c.h.b16 %v790
        %v1090 = vunpack.c.l.b16 %v791
        %v1091 = vunpack.c.h.b16 %v791
        %v1092 = vunpack.c.l.b16 %v792
        %v1093 = vunpack.c.h.b16 %v792
        %v1094 = vunpack.c.l.b16 %v793
        %v1095 = vunpack.c.h.b16 %v793
        %v1096 = vunpack.c.l.b16 %v794
        %v1097 = vunpack.c.h.b16 %v794
        %v1098 = vunpack.c.l.b16 %v795
        %v1099 = vunpack.c.h.b16 %v795
        %v1100 = vunpack.c.l.b16 %v796
        %v1101 = vunpack.c.h.b16 %v796
        %v1102 = vunpack.c.l.b16 %v797
        %v1103 = vunpack.c.h.b16 %v797
        %v1104 = vunpack.c.l.b16 %v798
        %v1105 = vunpack.c.h.b16 %v798
        %v1106 = vunpack.c.l.b16 %v799
        %v1107 = vunpack.c.h.b16 %v799
        %v1108 = vunpack.c.l.b16 %v800
        %v1109 = vunpack.c.h.b16 %v800
        %v1110 = vunpack.c.l.b16 %v801
        %v1111 = vunpack.c.h.b16 %v801
        %v1112 = vunpack.c.l.b16 %v802
        %v1113 = vunpack.c.h.b16 %v802
        %v1114 = vunpack.c.l.b16 %v803
        %v1115 = vunpack.c.h.b16 %v803
        %v1116 = vunpack.c.l.b16 %v804
        %v1117 = vunpack.c.h.b16 %v804
        %v1118 = vunpack.c.l.b16 %v805
        %v1119 = vunpack.c.h.b16 %v805
        %v1120 = vunpack.c.l.b16 %v806
        %v1121 = vunpack.c.h.b16 %v806
        %v1122 = vunpack.c.l.b16 %v807
        %v1123 = vunpack.c.h.b16 %v807
        %v1124 = vunpack.c.l.b16 %v808
        %v1125 = vunpack.c.h.b16 %v808
        %v1126 = vunpack.c.l.b16 %v809
        %v1127 = vunpack.c.h.b16 %v809
        %v1128 = vunpack.c.l.b16 %v810
        %v1129 = vunpack.c.h.b16 %v810
        %v1130 = vunpack.c.l.b16 %v811
        %v1131 = vunpack.c.h.b16 %v811
        %v1132 = vunpack.c.l.b16 %v812
        %v1133 = vunpack.c.h.b16 %v812
        %v1134 = vunpack.c.l.b16 %v813
        %v1135 = vunpack.c.h.b16 %v813
        %v1136 = vunpack.c.l.b16 %v814
        %v1137 = vunpack.c.h.b16 %v814
        %v1138 = vunpack.c.l.b16 %v815
        %v1139 = vunpack.c.h.b16 %v815
        %v1140 = vunpack.c.l.b16 %v816
        %v1141 = vunpack.c.h.b16 %v816
        %v1142 = vunpack.c.l.b16 %v817
        %v1143 = vunpack.c.h.b16 %v817
        %v1144 = vunpack.c.l.b16 %v818
        %v1145 = vunpack.c.h.b16 %v818
        %v1146 = vunpack.c.l.b16 %v819
        %v1147 = vunpack.c.h.b16 %v819
        %v1148 = vunpack.c.l.b16 %v820
        %v1149 = vunpack.c.h.b16 %v820
        %v1150 = vunpack.c.l.b16 %v821
        %v1151 = vunpack.c.h.b16 %v821
        %v1152 = vunpack.c.l.b16 %v822
        %v1153 = vunpack.c.h.b16 %v822
        %v1154 = vunpack.c.l.b16 %v823
        %v1155 = vunpack.c.h.b16 %v823
        %v1156 = vunpack.c.l.b16 %v824
        %v1157 = vunpack.c.h.b16 %v824
        %v1158 = vunpack.c.l.b16 %v825
        %v1159 = vunpack.c.h.b16 %v825
        %v1160 = vunpack.c.l.b16 %v826
        %v1161 = vunpack.c.h.b16 %v826
        %v1162 = vunpack.c.l.b16 %v827
        %v1163 = vunpack.c.h.b16 %v827
        %v1164 = vunpack.c.l.b16 %v828
        %v1165 = vunpack.c.h.b16 %v828
        %v1166 = vunpack.c.l.b16 %v829
        %v1167 = vunpack.c.h.b16 %v829
        %v1168 = vunpack.c.l.b16 %v830
        %v1169 = vunpack.c.h.b16 %v830
        %v1170 = vunpack.c.l.b16 %v831
        %v1171 = vunpack.c.h.b16 %v831
        %v1172 = vunpack.c.l.b16 %v832
        %v1173 = vunpack.c.h.b16 %v832
        %v1174 = vunpack.c.l.b16 %v833
        %v1175 = vunpack.c.h.b16 %v833
        %v1176 = vunpack.c.l.b16 %v834
        %v1177 = vunpack.c.h.b16 %v834
        %v1178 = vunpack.c.l.b16 %v835
        %v1179 = vunpack.c.h.b16 %v835
        %v1180 = vunpack.c.l.b16 %v836
        %v1181 = vunpack.c.h.b16 %v836
        %v1182 = vunpack.c.l.b16 %v837
        %v1183 = vunpack.c.h.b16 %v837
        %v1184 = vunpack.c.l.b16 %v838
        %v1185 = vunpack.c.h.b16 %v838
        %v1186 = vunpack.c.l.b16 %v839
        %v1187 = vunpack.c.h.b16 %v839
        %v1188 = vunpack.c.l.b16 %v840
        %v1189 = vunpack.c.h.b16 %v840
        %v1190 = vunpack.c.l.b16 %v841
        %v1191 = vunpack.c.h.b16 %v841
        %v1192 = vunpack.c.l.b16 %v842
        %v1193 = vunpack.c.h.b16 %v842
        %v1194 = vunpack.c.l.b16 %v843
        %v1195 = vunpack.c.h.b16 %v843
        %v1196 = vunpack.c.l.b16 %v844
        %v1197 = vunpack.c.h.b16 %v844
        %v1198 = vunpack.c.l.b16 %v845
        %v1199 = vunpack.c.h.b16 %v845
        %v1200 = vunpack.c.l.b16 %v846
        %v1201 = vunpack.c.h.b16 %v846
        %v1202 = vunpack.c.l.b16 %v847
        %v1203 = vunpack.c.h.b16 %v847
        %v1204 = vunpack.c.l.b16 %v848
        %v1205 = vunpack.c.h.b16 %v848
        %v1206 = vunpack.c.l.b16 %v849
        %v1207 = vunpack.c.h.b16 %v849
        %v1208 = vunpack.c.l.b16 %v850
        %v1209 = vunpack.c.h.b16 %v850
        %v1210 = vunpack.c.l.b16 %v851
        %v1211 = vunpack.c.h.b16 %v851
        %v1212 = vunpack.c.l.b16 %v852
        %v1213 = vunpack.c.h.b16 %v852
        %v1214 = vunpack.c.l.b16 %v853
        %v1215 = vunpack.c.h.b16 %v853
        %v1216 = vunpack.c.l.b16 %v854
        %v1217 = vunpack.c.h.b16 %v854
        %v1218 = vunpack.c.l.b16 %v855
        %v1219 = vunpack.c.h.b16 %v855
        %v1220 = vunpack.c.l.b16 %v856
        %v1221 = vunpack.c.h.b16 %v856
        %v1222 = vunpack.c.l.b16 %v857
        %v1223 = vunpack.c.h.b16 %v857
        %v1224 = vunpack.c.l.b16 %v858
        %v1225 = vunpack.c.h.b16 %v858
        %v1226 = vunpack.c.l.b16 %v859
        %v1227 = vunpack.c.h.b16 %v859
        %v1228 = vunpack.c.l.b16 %v860
        %v1229 = vunpack.c.h.b16 %v860
        %v1230 = vunpack.c.l.b16 %v861
        %v1231 = vunpack.c.h.b16 %v861
        %v1232 = vunpack.c.l.b16 %v862
        %v1233 = vunpack.c.h.b16 %v862
        %v1234 = vunpack.c.l.b16 %v863
        %v1235 = vunpack.c.h.b16 %v863
        %v1236 = vunpack.c.l.b16 %v864
        %v1237 = vunpack.c.h.b16 %v864
        %v1238 = vunpack.c.l.b16 %v865
        %v1239 = vunpack.c.h.b16 %v865
        %v1240 = vunpack.c.l.b16 %v866
        %v1241 = vunpack.c.h.b16 %v866
        %v1242 = vunpack.c.l.b16 %v867
        %v1243 = vunpack.c.h.b16 %v867
        %v1244 = vunpack.c.l.b16 %v868
        %v1245 = vunpack.c.h.b16 %v868
        %v1246 = vunpack.c.l.b16 %v869
        %v1247 = vunpack.c.h.b16 %v869
        %v1248 = vunpack.c.l.b16 %v870
        %v1249 = vunpack.c.h.b16 %v870
        %v1250 = vunpack.c.l.b16 %v871
        %v1251 = vunpack.c.h.b16 %v871
        %v1252 = vunpack.c.l.b16 %v872
        %v1253 = vunpack.c.h.b16 %v872
        %v1254 = vunpack.c.l.b16 %v873
        %v1255 = vunpack.c.h.b16 %v873
        %v1256 = vunpack.c.l.b16 %v874
        %v1257 = vunpack.c.h.b16 %v874
        %v1258 = vunpack.c.l.b16 %v875
        %v1259 = vunpack.c.h.b16 %v875
        %v1260 = vunpack.c.l.b16 %v876
        %v1261 = vunpack.c.h.b16 %v876
        %v1262 = vunpack.c.l.b16 %v877
        %v1263 = vunpack.c.h.b16 %v877
        %v1264 = vunpack.c.l.b16 %v878
        %v1265 = vunpack.c.h.b16 %v878
        %v1266 = vunpack.c.l.b16 %v879
        %v1267 = vunpack.c.h.b16 %v879
        %v1268 = vunpack.c.l.b16 %v880
        %v1269 = vunpack.c.h.b16 %v880
        %v1270 = vunpack.c.l.b16 %v881
        %v1271 = vunpack.c.h.b16 %v881
        %v1272 = vunpack.c.l.b16 %v882
        %v1273 = vunpack.c.h.b16 %v882
        %v1274 = vunpack.c.l.b16 %v883
        %v1275 = vunpack.c.h.b16 %v883
        %v1276 = vunpack.c.l.b16 %v884
        %v1277 = vunpack.c.h.b16 %v884
        %v1278 = vunpack.c.l.b16 %v885
        %v1279 = vunpack.c.h.b16 %v885
        %v1280 = vunpack.c.l.b16 %v886
        %v1281 = vunpack.c.h.b16 %v886
        %v1282 = vunpack.c.l.b16 %v887
        %v1283 = vunpack.c.h.b16 %v887
        %v1284 = vunpack.c.l.b16 %v888
        %v1285 = vunpack.c.h.b16 %v888
        %v1286 = vunpack.c.l.b16 %v889
        %v1287 = vunpack.c.h.b16 %v889
        %v1288 = vunpack.c.l.b16 %v890
        %v1289 = vunpack.c.h.b16 %v890
        %v1290 = vunpack.c.l.b16 %v891
        %v1291 = vunpack.c.h.b16 %v891
        %v1292 = vunpack.c.l.b16 %v892
        %v1293 = vunpack.c.h.b16 %v892
        %v1294 = vunpack.c.l.b16 %v893
        %v1295 = vunpack.c.h.b16 %v893
        %v1296 = vunpack.c.l.b16 %v894
        %v1297 = vunpack.c.h.b16 %v894
        %v1298 = vunpack.c.l.b16 %v895
        %v1299 = vunpack.c.h.b16 %v895
        %v1300 = vunpack.c.l.b16 %v896
        %v1301 = vunpack.c.h.b16 %v896
        %v1302 = vunpack.c.l.b16 %v897
        %v1303 = vunpack.c.h.b16 %v897
        %v1304 = vunpack.c.l.b16 %v898
        %v1305 = vunpack.c.h.b16 %v898
        %v1306 = vunpack.c.l.b16 %v899
        %v1307 = vunpack.c.h.b16 %v899
        %v1308 = vunpack.c.l.b16 %v900
        %v1309 = vunpack.c.h.b16 %v900
        %v1310 = vunpack.c.l.b16 %v901
        %v1311 = vunpack.c.h.b16 %v901
        %v1312 = vunpack.c.l.b16 %v902
        %v1313 = vunpack.c.h.b16 %v902
        %v1314 = vunpack.c.l.b16 %v903
        %v1315 = vunpack.c.h.b16 %v903
        %v1316 = vunpack.c.l.b16 %v904
        %v1317 = vunpack.c.h.b16 %v904
        %v1318 = vunpack.c.l.b16 %v905
        %v1319 = vunpack.c.h.b16 %v905
        %v1320 = vunpack.c.l.b16 %v906
        %v1321 = vunpack.c.h.b16 %v906
        %v1322 = vunpack.c.l.b16 %v907
        %v1323 = vunpack.c.h.b16 %v907
        %v1324 = vunpack.c.l.b16 %v908
        %v1325 = vunpack.c.h.b16 %v908
        %v1326 = vunpack.c.l.b16 %v909
        %v1327 = vunpack.c.h.b16 %v909
        %v1328 = vunpack.c.l.b16 %v910
        %v1329 = vunpack.c.h.b16 %v910
        %v1330 = vunpack.c.l.b16 %v911
        %v1331 = vunpack.c.h.b16 %v911
        %v1332 = vunpack.c.l.b16 %v912
        %v1333 = vunpack.c.h.b16 %v912
        %v1334 = vunpack.c.l.b16 %v913
        %v1335 = vunpack.c.h.b16 %v913
        %v1336 = vunpack.c.l.b16 %v914
        %v1337 = vunpack.c.h.b16 %v914
        %v1338 = vunpack.c.l.b16 %v915
        %v1339 = vunpack.c.h.b16 %v915
        %v1340 = vunpack.c.l.b16 %v916
        %v1341 = vunpack.c.h.b16 %v916
        %v1342 = vpack.c.b16 %v1094, %v1086
        %v1343 = vpack.c.b16 %v1095, %v1087
        %v1344 = vpack.c.b16 %v1096, %v1088
        %v1345 = vpack.c.b16 %v1097, %v1089
        %v1346 = vpack.c.b16 %v1098, %v1090
        %v1347 = vpack.c.b16 %v1099, %v1091
        %v1348 = vpack.c.b16 %v1100, %v1092
        %v1349 = vpack.c.b16 %v1101, %v1093
        %v1350 = vpack.c.b16 %v1110, %v1102
        %v1351 = vpack.c.b16 %v1111, %v1103
        %v1352 = vpack.c.b16 %v1112, %v1104
        %v1353 = vpack.c.b16 %v1113, %v1105
        %v1354 = vpack.c.b16 %v1114, %v1106
        %v1355 = vpack.c.b16 %v1115, %v1107
        %v1356 = vpack.c.b16 %v1116, %v1108
        %v1357 = vpack.c.b16 %v1117, %v1109
        %v1358 = vpack.c.b16 %v1126, %v1118
        %v1359 = vpack.c.b16 %v1127, %v1119
        %v1360 = vpack.c.b16 %v1128, %v1120
        %v1361 = vpack.c.b16 %v1129, %v1121
        %v1362 = vpack.c.b16 %v1130, %v1122
        %v1363 = vpack.c.b16 %v1131, %v1123
        %v1364 = vpack.c.b16 %v1132, %v1124
        %v1365 = vpack.c.b16 %v1133, %v1125
        %v1366 = vpack.c.b16 %v1142, %v1134
        %v1367 = vpack.c.b16 %v1143, %v1135
        %v1368 = vpack.c.b16 %v1144, %v1136
        %v1369 = vpack.c.b16 %v1145, %v1137
        %v1370 = vpack.c.b16 %v1146, %v1138
        %v1371 = vpack.c.b16 %v1147, %v1139
        %v1372 = vpack.c.b16 %v1148, %v1140
        %v1373 = vpack.c.b16 %v1149, %v1141
        %v1374 = vpack.c.b16 %v1158, %v1150
        %v1375 = vpack.c.b16 %v1159, %v1151
        %v1376 = vpack.c.b16 %v1160, %v1152
        %v1377 = vpack.c.b16 %v1161, %v1153
        %v1378 = vpack.c.b16 %v1162, %v1154
        %v1379 = vpack.c.b16 %v1163, %v1155
        %v1380 = vpack.c.b16 %v1164, %v1156
        %v1381 = vpack.c.b16 %v1165, %v1157
        %v1382 = vpack.c.b16 %v1174, %v1166
        %v1383 = vpack.c.b16 %v1175, %v1167
        %v1384 = vpack.c.b16 %v1176, %v1168
        %v1385 = vpack.c.b16 %v1177, %v1169
        %v1386 = vpack.c.b16 %v1178, %v1170
        %v1387 = vpack.c.b16 %v1179, %v1171
        %v1388 = vpack.c.b16 %v1180, %v1172
        %v1389 = vpack.c.b16 %v1181, %v1173
        %v1390 = vpack.c.b16 %v1190, %v1182
        %v1391 = vpack.c.b16 %v1191, %v1183
        %v1392 = vpack.c.b16 %v1192, %v1184
        %v1393 = vpack.c.b16 %v1193, %v1185
        %v1394 = vpack.c.b16 %v1194, %v1186
        %v1395 = vpack.c.b16 %v1195, %v1187
        %v1396 = vpack.c.b16 %v1196, %v1188
        %v1397 = vpack.c.b16 %v1197, %v1189
        %v1398 = vpack.c.b16 %v1206, %v1198
        %v1399 = vpack.c.b16 %v1207, %v1199
        %v1400 = vpack.c.b16 %v1208, %v1200
        %v1401 = vpack.c.b16 %v1209, %v1201
        %v1402 = vpack.c.b16 %v1210, %v1202
        %v1403 = vpack.c.b16 %v1211, %v1203
        %v1404 = vpack.c.b16 %v1212, %v1204
        %v1405 = vpack.c.b16 %v1213, %v1205
        %v1406 = vpack.c.b16 %v1222, %v1214
        %v1407 = vpack.c.b16 %v1223, %v1215
        %v1408 = vpack.c.b16 %v1224, %v1216
        %v1409 = vpack.c.b16 %v1225, %v1217
        %v1410 = vpack.c.b16 %v1226, %v1218
        %v1411 = vpack.c.b16 %v1227, %v1219
        %v1412 = vpack.c.b16 %v1228, %v1220
        %v1413 = vpack.c.b16 %v1229, %v1221
        %v1414 = vpack.c.b16 %v1238, %v1230
        %v1415 = vpack.c.b16 %v1239, %v1231
        %v1416 = vpack.c.b16 %v1240, %v1232
        %v1417 = vpack.c.b16 %v1241, %v1233
        %v1418 = vpack.c.b16 %v1242, %v1234
        %v1419 = vpack.c.b16 %v1243, %v1235
        %v1420 = vpack.c.b16 %v1244, %v1236
        %v1421 = vpack.c.b16 %v1245, %v1237
        %v1422 = vpack.c.b16 %v1254, %v1246
        %v1423 = vpack.c.b16 %v1255, %v1247
        %v1424 = vpack.c.b16 %v1256, %v1248
        %v1425 = vpack.c.b16 %v1257, %v1249
        %v1426 = vpack.c.b16 %v1258, %v1250
        %v1427 = vpack.c.b16 %v1259, %v1251
        %v1428 = vpack.c.b16 %v1260, %v1252
        %v1429 = vpack.c.b16 %v1261, %v1253
        %v1430 = vpack.c.b16 %v1270, %v1262
        %v1431 = vpack.c.b16 %v1271, %v1263
        %v1432 = vpack.c.b16 %v1272, %v1264
        %v1433 = vpack.c.b16 %v1273, %v1265
        %v1434 = vpack.c.b16 %v1274, %v1266
        %v1435 = vpack.c.b16 %v1275, %v1267
        %v1436 = vpack.c.b16 %v1276, %v1268
        %v1437 = vpack.c.b16 %v1277, %v1269
        %v1438 = vpack.c.b16 %v1286, %v1278
        %v1439 = vpack.c.b16 %v1287, %v1279
        %v1440 = vpack.c.b16 %v1288, %v1280
        %v1441 = vpack.c.b16 %v1289, %v1281
        %v1442 = vpack.c.b16 %v1290, %v1282
        %v1443 = vpack.c.b16 %v1291, %v1283
        %v1444 = vpack.c.b16 %v1292, %v1284
        %v1445 = vpack.c.b16 %v1293, %v1285
        %v1446 = vpack.c.b16 %v1302, %v1294
        %v1447 = vpack.c.b16 %v1303, %v1295
        %v1448 = vpack.c.b16 %v1304, %v1296
        %v1449 = vpack.c.b16 %v1305, %v1297
        %v1450 = vpack.c.b16 %v1306, %v1298
        %v1451 = vpack.c.b16 %v1307, %v1299
        %v1452 = vpack.c.b16 %v1308, %v1300
        %v1453 = vpack.c.b16 %v1309, %v1301
        %v1454 = vpack.c.b16 %v1318, %v1310
        %v1455 = vpack.c.b16 %v1319, %v1311
        %v1456 = vpack.c.b16 %v1320, %v1312
        %v1457 = vpack.c.b16 %v1321, %v1313
        %v1458 = vpack.c.b16 %v1322, %v1314
        %v1459 = vpack.c.b16 %v1323, %v1315
        %v1460 = vpack.c.b16 %v1324, %v1316
        %v1461 = vpack.c.b16 %v1325, %v1317
        %v1462 = vpack.c.b16 %v1334, %v1326
        %v1463 = vpack.c.b16 %v1335, %v1327
        %v1464 = vpack.c.b16 %v1336, %v1328
        %v1465 = vpack.c.b16 %v1337, %v1329
        %v1466 = vpack.c.b16 %v1338, %v1330
        %v1467 = vpack.c.b16 %v1339, %v1331
        %v1468 = vpack.c.b16 %v1340, %v1332
        %v1469 = vpack.c.b16 %v1341, %v1333
        %1598 = vmatprep.subr.bf16.mxu0 %v1343
        %1599 = vmatpush1.bf16.msra.mxu0 %v1342
        %1600 = vmatprep.subr.bf16.mxu0 %v1351
        %1601 = vmatpush1.bf16.msra.mxu0 %v1350
        %1602 = vmatprep.subr.bf16.mxu0 %v1359
        %1603 = vmatpush1.bf16.msra.mxu0 %v1358
        %1604 = vmatprep.subr.bf16.mxu0 %v1367
        %1605 = vmatpush1.bf16.msra.mxu0 %v1366
        %1606 = vmatprep.subr.bf16.mxu0 %v1375
        %1607 = vmatpush1.bf16.msra.mxu0 %v1374
        %1608 = vmatprep.subr.bf16.mxu0 %v1383
        %1609 = vmatpush1.bf16.msra.mxu0 %v1382
        %1610 = vmatprep.subr.bf16.mxu0 %v1391
        %1611 = vmatpush1.bf16.msra.mxu0 %v1390
        %1612 = vmatprep.subr.bf16.mxu0 %v1399
        %1613 = vmatpush1.bf16.msra.mxu0 %v1398
        %1614 = vmatprep.subr.bf16.mxu0 %v1407
        %1615 = vmatpush1.bf16.msra.mxu0 %v1406
        %1616 = vmatprep.subr.bf16.mxu0 %v1415
        %1617 = vmatpush1.bf16.msra.mxu0 %v1414
        %1618 = vmatprep.subr.bf16.mxu0 %v1423
        %1619 = vmatpush1.bf16.msra.mxu0 %v1422
        %1620 = vmatprep.subr.bf16.mxu0 %v1431
        %1621 = vmatpush1.bf16.msra.mxu0 %v1430
        %1622 = vmatprep.subr.bf16.mxu0 %v1439
        %1623 = vmatpush1.bf16.msra.mxu0 %v1438
        %1624 = vmatprep.subr.bf16.mxu0 %v1447
        %1625 = vmatpush1.bf16.msra.mxu0 %v1446
        %1626 = vmatprep.subr.bf16.mxu0 %v1455
        %1627 = vmatpush1.bf16.msra.mxu0 %v1454
        %1628 = vmatprep.subr.bf16.mxu0 %v1463
        %1629 = vmatpush1.bf16.msra.mxu0 %v1462
        %1630 = vmatprep.mubr.bf16.mxu0 %v784
        %1631 = vmatmul.mubr.bf16.gmra.mrb[0].mxu0 %v783
        %v1632 = vpop.f32.mrb[0].mxu0
        %v1633 = vadd.f32 %v921, %v1632
        %v1634 = vpop.f32.mrb[0].mxu0
        %v1635 = vadd.f32 %v925, %v1634
        %v1636 = vpop.f32.mrb[0].mxu0
        %v1637 = vadd.f32 %v921, %v1636
        %v1638 = vpop.f32.mrb[0].mxu0
        %v1639 = vadd.f32 %v925, %v1638
        %1640 = vmatprep.mubr.bf16.mxu0 %v786
        %1641 = vmatmul.mubr.bf16.gmra.mrb[0].mxu0 %v785
        %v1642 = vpop.f32.mrb[0].mxu0
        %v1643 = vadd.f32 %v921, %v1642
        %v1644 = vpop.f32.mrb[0].mxu0
        %v1645 = vadd.f32 %v925, %v1644
        %v1646 = vpop.f32.mrb[0].mxu0
        %v1647 = vadd.f32 %v921, %v1646
        %v1648 = vpop.f32.mrb[0].mxu0
        %v1649 = vadd.f32 %v925, %v1648
        %1650 = vmatprep.mubr.bf16.mxu0 %v788
        %1651 = vmatmul.mubr.bf16.gmra.mrb[0].mxu0 %v787
        %v1652 = vpop.f32.mrb[0].mxu0
        %v1653 = vadd.f32 %v921, %v1652
        %v1654 = vpop.f32.mrb[0].mxu0
        %v1655 = vadd.f32 %v925, %v1654
        %v1656 = vpop.f32.mrb[0].mxu0
        %v1657 = vadd.f32 %v921, %v1656
        %v1658 = vpop.f32.mrb[0].mxu0
        %v1659 = vadd.f32 %v925, %v1658
        %1660 = vdwg.mxu0
        %1661 = vmatprep.subr.bf16.mxu0 %v1345
        %1662 = vmatpush1.bf16.msra.mxu0 %v1344
        %1663 = vmatprep.subr.bf16.mxu0 %v1353
        %1664 = vmatpush1.bf16.msra.mxu0 %v1352
        %1665 = vmatprep.subr.bf16.mxu0 %v1361
        %1666 = vmatpush1.bf16.msra.mxu0 %v1360
        %1667 = vmatprep.subr.bf16.mxu0 %v1369
        %1668 = vmatpush1.bf16.msra.mxu0 %v1368
        %1669 = vmatprep.subr.bf16.mxu0 %v1377
        %1670 = vmatpush1.bf16.msra.mxu0 %v1376
        %1671 = vmatprep.subr.bf16.mxu0 %v1385
        %1672 = vmatpush1.bf16.msra.mxu0 %v1384
        %1673 = vmatprep.subr.bf16.mxu0 %v1393
        %1674 = vmatpush1.bf16.msra.mxu0 %v1392
        %1675 = vmatprep.subr.bf16.mxu0 %v1401
        %1676 = vmatpush1.bf16.msra.mxu0 %v1400
        %1677 = vmatprep.subr.bf16.mxu0 %v1409
        %1678 = vmatpush1.bf16.msra.mxu0 %v1408
        %1679 = vmatprep.subr.bf16.mxu0 %v1417
        %1680 = vmatpush1.bf16.msra.mxu0 %v1416
        %1681 = vmatprep.subr.bf16.mxu0 %v1425
        %1682 = vmatpush1.bf16.msra.mxu0 %v1424
        %1683 = vmatprep.subr.bf16.mxu0 %v1433
        %1684 = vmatpush1.bf16.msra.mxu0 %v1432
        %1685 = vmatprep.subr.bf16.mxu0 %v1441
        %1686 = vmatpush1.bf16.msra.mxu0 %v1440
        %1687 = vmatprep.subr.bf16.mxu0 %v1449
        %1688 = vmatpush1.bf16.msra.mxu0 %v1448
        %1689 = vmatprep.subr.bf16.mxu0 %v1457
        %1690 = vmatpush1.bf16.msra.mxu0 %v1456
        %1691 = vmatprep.subr.bf16.mxu0 %v1465
        %1692 = vmatpush1.bf16.msra.mxu0 %v1464
        %1693 = vmatprep.mubr.bf16.mxu0 %v784
        %1694 = vmatmul.mubr.bf16.gmra.mrb[0].mxu0 %v783
        %v1695 = vpop.f32.mrb[0].mxu0
        %v1696 = vadd.f32 %v929, %v1695
        %v1697 = vpop.f32.mrb[0].mxu0
        %v1698 = vadd.f32 %v933, %v1697
        %v1699 = vpop.f32.mrb[0].mxu0
        %v1700 = vadd.f32 %v929, %v1699
        %v1701 = vpop.f32.mrb[0].mxu0
        %v1702 = vadd.f32 %v933, %v1701
        %1703 = vmatprep.mubr.bf16.mxu0 %v786
        %1704 = vmatmul.mubr.bf16.gmra.mrb[0].mxu0 %v785
        %v1705 = vpop.f32.mrb[0].mxu0
        %v1706 = vadd.f32 %v929, %v1705
        %v1707 = vpop.f32.mrb[0].mxu0
        %v1708 = vadd.f32 %v933, %v1707
        %v1709 = vpop.f32.mrb[0].mxu0
        %v1710 = vadd.f32 %v929, %v1709
        %v1711 = vpop.f32.mrb[0].mxu0
        %v1712 = vadd.f32 %v933, %v1711
        %1713 = vmatprep.mubr.bf16.mxu0 %v788
        %1714 = vmatmul.mubr.bf16.gmra.mrb[0].mxu0 %v787
        %v1715 = vpop.f32.mrb[0].mxu0
        %v1716 = vadd.f32 %v929, %v1715
        %v1717 = vpop.f32.mrb[0].mxu0
        %v1718 = vadd.f32 %v933, %v1717
        %v1719 = vpop.f32.mrb[0].mxu0
        %v1720 = vadd.f32 %v929, %v1719
        %v1721 = vpop.f32.mrb[0].mxu0
        %v1722 = vadd.f32 %v933, %v1721
        %1723 = vdwg.mxu0
        %1724 = vmatprep.subr.bf16.mxu0 %v1347
        %1725 = vmatpush1.bf16.msra.mxu0 %v1346
        %1726 = vmatprep.subr.bf16.mxu0 %v1355
        %1727 = vmatpush1.bf16.msra.mxu0 %v1354
        %1728 = vmatprep.subr.bf16.mxu0 %v1363
        %1729 = vmatpush1.bf16.msra.mxu0 %v1362
        %1730 = vmatprep.subr.bf16.mxu0 %v1371
        %1731 = vmatpush1.bf16.msra.mxu0 %v1370
        %1732 = vmatprep.subr.bf16.mxu0 %v1379
        %1733 = vmatpush1.bf16.msra.mxu0 %v1378
        %1734 = vmatprep.subr.bf16.mxu0 %v1387
        %1735 = vmatpush1.bf16.msra.mxu0 %v1386
        %1736 = vmatprep.subr.bf16.mxu0 %v1395
        %1737 = vmatpush1.bf16.msra.mxu0 %v1394
        %1738 = vmatprep.subr.bf16.mxu0 %v1403
        %1739 = vmatpush1.bf16.msra.mxu0 %v1402
        %1740 = vmatprep.subr.bf16.mxu0 %v1411
        %1741 = vmatpush1.bf16.msra.mxu0 %v1410
        %1742 = vmatprep.subr.bf16.mxu0 %v1419
        %1743 = vmatpush1.bf16.msra.mxu0 %v1418
        %1744 = vmatprep.subr.bf16.mxu0 %v1427
        %1745 = vmatpush1.bf16.msra.mxu0 %v1426
        %1746 = vmatprep.subr.bf16.mxu0 %v1435
        %1747 = vmatpush1.bf16.msra.mxu0 %v1434
        %1748 = vmatprep.subr.bf16.mxu0 %v1443
        %1749 = vmatpush1.bf16.msra.mxu0 %v1442
        %1750 = vmatprep.subr.bf16.mxu0 %v1451
        %1751 = vmatpush1.bf16.msra.mxu0 %v1450
        %1752 = vmatprep.subr.bf16.mxu0 %v1459
        %1753 = vmatpush1.bf16.msra.mxu0 %v1458
        %1754 = vmatprep.subr.bf16.mxu0 %v1467
        %1755 = vmatpush1.bf16.msra.mxu0 %v1466
        %1756 = vmatprep.mubr.bf16.mxu0 %v784
        %1757 = vmatmul.mubr.bf16.gmra.mrb[0].mxu0 %v783
        %v1758 = vpop.f32.mrb[0].mxu0
        %v1759 = vadd.f32 %v937, %v1758
        %v1760 = vpop.f32.mrb[0].mxu0
        %v1761 = vadd.f32 %v941, %v1760
        %v1762 = vpop.f32.mrb[0].mxu0
        %v1763 = vadd.f32 %v937, %v1762
        %v1764 = vpop.f32.mrb[0].mxu0
        %v1765 = vadd.f32 %v941, %v1764
        %1766 = vmatprep.mubr.bf16.mxu0 %v786
        %1767 = vmatmul.mubr.bf16.gmra.mrb[0].mxu0 %v785
        %v1768 = vpop.f32.mrb[0].mxu0
        %v1769 = vadd.f32 %v937, %v1768
        %v1770 = vpop.f32.mrb[0].mxu0
        %v1771 = vadd.f32 %v941, %v1770
        %v1772 = vpop.f32.mrb[0].mxu0
        %v1773 = vadd.f32 %v937, %v1772
        %v1774 = vpop.f32.mrb[0].mxu0
        %v1775 = vadd.f32 %v941, %v1774
        %1776 = vmatprep.mubr.bf16.mxu0 %v788
        %1777 = vmatmul.mubr.bf16.gmra.mrb[0].mxu0 %v787
        %v1778 = vpop.f32.mrb[0].mxu0
        %v1779 = vadd.f32 %v937, %v1778
        %v1780 = vpop.f32.mrb[0].mxu0
        %v1781 = vadd.f32 %v941, %v1780
        %v1782 = vpop.f32.mrb[0].mxu0
        %v1783 = vadd.f32 %v937, %v1782
        %v1784 = vpop.f32.mrb[0].mxu0
        %v1785 = vadd.f32 %v941, %v1784
        %1786 = vdwg.mxu0
        %1787 = vmatprep.subr.bf16.mxu0 %v1349
        %1788 = vmatpush1.bf16.msra.mxu0 %v1348
        %1789 = vmatprep.subr.bf16.mxu0 %v1357
        %1790 = vmatpush1.bf16.msra.mxu0 %v1356
        %1791 = vmatprep.subr.bf16.mxu0 %v1365
        %1792 = vmatpush1.bf16.msra.mxu0 %v1364
        %1793 = vmatprep.subr.bf16.mxu0 %v1373
        %1794 = vmatpush1.bf16.msra.mxu0 %v1372
        %1795 = vmatprep.subr.bf16.mxu0 %v1381
        %1796 = vmatpush1.bf16.msra.mxu0 %v1380
        %1797 = vmatprep.subr.bf16.mxu0 %v1389
        %1798 = vmatpush1.bf16.msra.mxu0 %v1388
        %1799 = vmatprep.subr.bf16.mxu0 %v1397
        %1800 = vmatpush1.bf16.msra.mxu0 %v1396
        %1801 = vmatprep.subr.bf16.mxu0 %v1405
        %1802 = vmatpush1.bf16.msra.mxu0 %v1404
        %1803 = vmatprep.subr.bf16.mxu0 %v1413
        %1804 = vmatpush1.bf16.msra.mxu0 %v1412
        %1805 = vmatprep.subr.bf16.mxu0 %v1421
        %1806 = vmatpush1.bf16.msra.mxu0 %v1420
        %1807 = vmatprep.subr.bf16.mxu0 %v1429
        %1808 = vmatpush1.bf16.msra.mxu0 %v1428
        %1809 = vmatprep.subr.bf16.mxu0 %v1437
        %1810 = vmatpush1.bf16.msra.mxu0 %v1436
        %1811 = vmatprep.subr.bf16.mxu0 %v1445
        %1812 = vmatpush1.bf16.msra.mxu0 %v1444
        %1813 = vmatprep.subr.bf16.mxu0 %v1453
        %1814 = vmatpush1.bf16.msra.mxu0 %v1452
        %1815 = vmatprep.subr.bf16.mxu0 %v1461
        %1816 = vmatpush1.bf16.msra.mxu0 %v1460
        %1817 = vmatprep.subr.bf16.mxu0 %v1469
        %1818 = vmatpush1.bf16.msra.mxu0 %v1468
        %1819 = vmatprep.mubr.bf16.mxu0 %v784
        %1820 = vmatmul.mubr.bf16.gmra.mrb[0].mxu0 %v783
        %v1821 = vpop.f32.mrb[0].mxu0
        %v1822 = vadd.f32 %v945, %v1821
        %v1823 = vpop.f32.mrb[0].mxu0
        %v1824 = vadd.f32 %v949, %v1823
        %v1825 = vpop.f32.mrb[0].mxu0
        %v1826 = vadd.f32 %v945, %v1825
        %v1827 = vpop.f32.mrb[0].mxu0
        %v1828 = vadd.f32 %v949, %v1827
        %1829 = vmatprep.mubr.bf16.mxu0 %v786
        %1830 = vmatmul.mubr.bf16.gmra.mrb[0].mxu0 %v785
        %v1831 = vpop.f32.mrb[0].mxu0
        %v1832 = vadd.f32 %v945, %v1831
        %v1833 = vpop.f32.mrb[0].mxu0
        %v1834 = vadd.f32 %v949, %v1833
        %v1835 = vpop.f32.mrb[0].mxu0
        %v1836 = vadd.f32 %v945, %v1835
        %v1837 = vpop.f32.mrb[0].mxu0
        %v1838 = vadd.f32 %v949, %v1837
        %1839 = vmatprep.mubr.bf16.mxu0 %v788
        %1840 = vmatmul.mubr.bf16.gmra.mrb[0].mxu0 %v787
        %v1841 = vpop.f32.mrb[0].mxu0
        %v1842 = vadd.f32 %v945, %v1841
        %v1843 = vpop.f32.mrb[0].mxu0
        %v1844 = vadd.f32 %v949, %v1843
        %v1845 = vpop.f32.mrb[0].mxu0
        %v1846 = vadd.f32 %v945, %v1845
        %v1847 = vpop.f32.mrb[0].mxu0
        %v1848 = vadd.f32 %v949, %v1847
        %1849 = vdwg.mxu0
        %v1850 = vmax.f32 %v1633, 0.0
        %v1851 = vmax.f32 %v1635, 0.0
        %v1852 = vmax.f32 %v1696, 0.0
        %v1853 = vmax.f32 %v1698, 0.0
        %v1854 = vmax.f32 %v1759, 0.0
        %v1855 = vmax.f32 %v1761, 0.0
        %v1856 = vmax.f32 %v1822, 0.0
        %v1857 = vmax.f32 %v1824, 0.0
        %v1858 = vmax.f32 %v1637, 0.0
        %v1859 = vmax.f32 %v1639, 0.0
        %v1860 = vmax.f32 %v1700, 0.0
        %v1861 = vmax.f32 %v1702, 0.0
        %v1862 = vmax.f32 %v1763, 0.0
        %v1863 = vmax.f32 %v1765, 0.0
        %v1864 = vmax.f32 %v1826, 0.0
        %v1865 = vmax.f32 %v1828, 0.0
        %v1866 = vmax.f32 %v1643, 0.0
        %v1867 = vmax.f32 %v1645, 0.0
        %v1868 = vmax.f32 %v1706, 0.0
        %v1869 = vmax.f32 %v1708, 0.0
        %v1870 = vmax.f32 %v1769, 0.0
        %v1871 = vmax.f32 %v1771, 0.0
        %v1872 = vmax.f32 %v1832, 0.0
        %v1873 = vmax.f32 %v1834, 0.0
        %v1874 = vmax.f32 %v1647, 0.0
        %v1875 = vmax.f32 %v1649, 0.0
        %v1876 = vmax.f32 %v1710, 0.0
        %v1877 = vmax.f32 %v1712, 0.0
        %v1878 = vmax.f32 %v1773, 0.0
        %v1879 = vmax.f32 %v1775, 0.0
        %v1880 = vmax.f32 %v1836, 0.0
        %v1881 = vmax.f32 %v1838, 0.0
        %v1882 = vmax.f32 %v1653, 0.0
        %v1883 = vmax.f32 %v1655, 0.0
        %v1884 = vmax.f32 %v1716, 0.0
        %v1885 = vmax.f32 %v1718, 0.0
        %v1886 = vmax.f32 %v1779, 0.0
        %v1887 = vmax.f32 %v1781, 0.0
        %v1888 = vmax.f32 %v1842, 0.0
        %v1889 = vmax.f32 %v1844, 0.0
        %v1890 = vmax.f32 %v1657, 0.0
        %v1891 = vmax.f32 %v1659, 0.0
        %v1892 = vmax.f32 %v1720, 0.0
        %v1893 = vmax.f32 %v1722, 0.0
        %v1894 = vmax.f32 %v1783, 0.0
        %v1895 = vmax.f32 %v1785, 0.0
        %v1896 = vmax.f32 %v1846, 0.0
        %v1897 = vmax.f32 %v1848, 0.0
        %v1898 = vpack.c.bf16 %v1858, %v1850
        %v1899 = vpack.c.bf16 %v1859, %v1851
        %v1900 = vpack.c.bf16 %v1860, %v1852
        %v1901 = vpack.c.bf16 %v1861, %v1853
        %v1902 = vpack.c.bf16 %v1862, %v1854
        %v1903 = vpack.c.bf16 %v1863, %v1855
        %v1904 = vpack.c.bf16 %v1864, %v1856
        %v1905 = vpack.c.bf16 %v1865, %v1857
        %v1906 = vpack.c.bf16 %v1874, %v1866
        %v1907 = vpack.c.bf16 %v1875, %v1867
        %v1908 = vpack.c.bf16 %v1876, %v1868
        %v1909 = vpack.c.bf16 %v1877, %v1869
        %v1910 = vpack.c.bf16 %v1878, %v1870
        %v1911 = vpack.c.bf16 %v1879, %v1871
        %v1912 = vpack.c.bf16 %v1880, %v1872
        %v1913 = vpack.c.bf16 %v1881, %v1873
        %v1914 = vpack.c.bf16 %v1890, %v1882
        %v1915 = vpack.c.bf16 %v1891, %v1883
        %v1916 = vpack.c.bf16 %v1892, %v1884
        %v1917 = vpack.c.bf16 %v1893, %v1885
        %v1918 = vpack.c.bf16 %v1894, %v1886
        %v1919 = vpack.c.bf16 %v1895, %v1887
        %v1920 = vpack.c.bf16 %v1896, %v1888
        %v1921 = vpack.c.bf16 %v1897, %v1889
        %v1946 = vunpack.c.l.b16 %v1898
        %v1947 = vunpack.c.l.b16 %v1899
        %v1948 = vunpack.c.l.b16 %v1900
        %v1949 = vunpack.c.l.b16 %v1901
        %v1950 = vunpack.c.l.b16 %v1902
        %v1951 = vunpack.c.l.b16 %v1903
        %v1952 = vunpack.c.l.b16 %v1904
        %v1953 = vunpack.c.l.b16 %v1905
        %v1954 = vunpack.c.h.b16 %v1898
        %v1955 = vunpack.c.h.b16 %v1899
        %v1956 = vunpack.c.h.b16 %v1900
        %v1957 = vunpack.c.h.b16 %v1901
        %v1958 = vunpack.c.h.b16 %v1902
        %v1959 = vunpack.c.h.b16 %v1903
        %v1960 = vunpack.c.h.b16 %v1904
        %v1961 = vunpack.c.h.b16 %v1905
        %v1962 = vunpack.c.l.b16 %v1906
        %v1963 = vunpack.c.l.b16 %v1907
        %v1964 = vunpack.c.l.b16 %v1908
        %v1965 = vunpack.c.l.b16 %v1909
        %v1966 = vunpack.c.l.b16 %v1910
        %v1967 = vunpack.c.l.b16 %v1911
        %v1968 = vunpack.c.l.b16 %v1912
        %v1969 = vunpack.c.l.b16 %v1913
        %v1970 = vunpack.c.h.b16 %v1906
        %v1971 = vunpack.c.h.b16 %v1907
        %v1972 = vunpack.c.h.b16 %v1908
        %v1973 = vunpack.c.h.b16 %v1909
        %v1974 = vunpack.c.h.b16 %v1910
        %v1975 = vunpack.c.h.b16 %v1911
        %v1976 = vunpack.c.h.b16 %v1912
        %v1977 = vunpack.c.h.b16 %v1913
        %v1978 = vunpack.c.l.b16 %v1914
        %v1979 = vunpack.c.l.b16 %v1915
        %v1980 = vunpack.c.l.b16 %v1916
        %v1981 = vunpack.c.l.b16 %v1917
        %v1982 = vunpack.c.l.b16 %v1918
        %v1983 = vunpack.c.l.b16 %v1919
        %v1984 = vunpack.c.l.b16 %v1920
        %v1985 = vunpack.c.l.b16 %v1921
        %v1986 = vunpack.c.h.b16 %v1914
        %v1987 = vunpack.c.h.b16 %v1915
        %v1988 = vunpack.c.h.b16 %v1916
        %v1989 = vunpack.c.h.b16 %v1917
        %v1990 = vunpack.c.h.b16 %v1918
        %v1991 = vunpack.c.h.b16 %v1919
        %v1992 = vunpack.c.h.b16 %v1920
        %v1993 = vunpack.c.h.b16 %v1921
        %v1994 = vpack.c.b16 %v1947, %v1946
        %v1995 = vpack.c.b16 %v1949, %v1948
        %v1996 = vpack.c.b16 %v1951, %v1950
        %v1997 = vpack.c.b16 %v1953, %v1952
        %v1998 = vpack.c.b16 %v1955, %v1954
        %v1999 = vpack.c.b16 %v1957, %v1956
        %v2000 = vpack.c.b16 %v1959, %v1958
        %v2001 = vpack.c.b16 %v1961, %v1960
        %v2002 = vpack.c.b16 %v1963, %v1962
        %v2003 = vpack.c.b16 %v1965, %v1964
        %v2004 = vpack.c.b16 %v1967, %v1966
        %v2005 = vpack.c.b16 %v1969, %v1968
        %v2006 = vpack.c.b16 %v1971, %v1970
        %v2007 = vpack.c.b16 %v1973, %v1972
        %v2008 = vpack.c.b16 %v1975, %v1974
        %v2009 = vpack.c.b16 %v1977, %v1976
        %v2010 = vpack.c.b16 %v1979, %v1978
        %v2011 = vpack.c.b16 %v1981, %v1980
        %v2012 = vpack.c.b16 %v1983, %v1982
        %v2013 = vpack.c.b16 %v1985, %v1984
        %v2014 = vpack.c.b16 %v1987, %v1986
        %v2015 = vpack.c.b16 %v1989, %v1988
        %v2016 = vpack.c.b16 %v1991, %v1990
        %v2017 = vpack.c.b16 %v1993, %v1992
        %2042 = vst [vmem:[%s286] sm:$0xff] %v1994
        %2043 = vst [vmem:[%s286 + $0x8] sm:$0xff] %v1995
        %2044 = vst [vmem:[%s286 + $0x10] sm:$0xff] %v1996
        %2045 = vst [vmem:[%s286 + $0x18] sm:$0xff] %v1997
        %2046 = vst [vmem:[%s286 + $0x20] sm:$0xff] %v1998
        %2047 = vst [vmem:[%s286 + $0x28] sm:$0xff] %v1999
        %2048 = vst [vmem:[%s286 + $0x30] sm:$0xff] %v2000
        %2049 = vst [vmem:[%s286 + $0x38] sm:$0xff] %v2001
        %2050 = vst [vmem:[%s286 + $0x40] sm:$0xff] %v2002
        %2051 = vst [vmem:[%s286 + $0x48] sm:$0xff] %v2003
        %2052 = vst [vmem:[%s286 + $0x50] sm:$0xff] %v2004
        %2053 = vst [vmem:[%s286 + $0x58] sm:$0xff] %v2005
        %2054 = vst [vmem:[%s286 + $0x60] sm:$0xff] %v2006
        %2055 = vst [vmem:[%s286 + $0x68] sm:$0xff] %v2007
        %2056 = vst [vmem:[%s286 + $0x70] sm:$0xff] %v2008
        %2057 = vst [vmem:[%s286 + $0x78] sm:$0xff] %v2009
        %2058 = vst [vmem:[%s286 + $0x80] sm:$0xff] %v2010
        %2059 = vst [vmem:[%s286 + $0x88] sm:$0xff] %v2011
        %2060 = vst [vmem:[%s286 + $0x90] sm:$0xff] %v2012
        %2061 = vst [vmem:[%s286 + $0x98] sm:$0xff] %v2013
        %2062 = vst [vmem:[%s286 + $0xa0] sm:$0xff] %v2014
        %2063 = vst [vmem:[%s286 + $0xa8] sm:$0xff] %v2015
        %2064 = vst [vmem:[%s286 + $0xb0] sm:$0xff] %v2016
        %2065 = vst [vmem:[%s286 + $0xb8] sm:$0xff] %v2017
        %s2066 = sand.u32 %s142, 1
        %s2067 = scalar_lea.sflag [#allocation4], %s2066
        %s2068 = sand.u32 %s142, 1
        %s2069 = smul.addr %s2068, 192
        %s2070 = scalar_lea.vmem [#allocation10], %s2069
        // Predicated region
        $region57: #{tpu_custom_call.1} parent=39 // pred_check
          %p2071 = pneg %p152
        $region58: #{tpu_custom_call.1} parent=39 // pred_check_branch
          %2073 = sbr.rel (%p2071) target = $region60
        $region59: #{tpu_custom_call.1} parent=39 // pred_region
          %s2074 = smul.u32 6, %s24
          %s2076 = ssub.s32 3072, 3072
          %2077 = vsyncadd %s2067, %s2076
          %s2078 = smul.addr %s2074, 8
          %s2079 = smul.addr %s2078, 64
          %s2080 = scalar_lea.hbm %s5, %s2079
          %s2081 = sshll.u32 %s2070, 4
          %s2082 = int_to_ptr.vmem [resolvable:$true] %s2081
          %2087 = dma.vmem_to_hbm [thread:$0]  %s2082, 3072, %s2080, %s2067, 512, 512, 32
        $region60: #{tpu_custom_call.1} parent=39 // pred_fallthru
          _
      $region40: #{tpu_custom_call.1} parent=5 // pred_fallthru
        _
      %p2088 = scmp.le.s32.totalorder 2, %s19
      // Predicated region
      $region61: #{tpu_custom_call.1} parent=5 // pred_check
        %p2089 = pneg %p2088
      $region62: #{tpu_custom_call.1} parent=5 // pred_check_branch
        %2091 = sbr.rel (%p2089) target = $region64
      $region63: #{tpu_custom_call.1} parent=5 // pred_region
        %s2092 = ssub.s32 %s19, 2
        // Predicated region
        $region65: #{tpu_custom_call.1} parent=63 // pred_check
          %p2093 = pneg %p158
        $region66: #{tpu_custom_call.1} parent=63 // pred_check_branch
          %2095 = sbr.rel (%p2093) target = $region68
        $region67: #{tpu_custom_call.1} parent=63 // pred_region
          %s2096 = sand.u32 %s143, 1
          %s2097 = scalar_lea.sflag [#allocation4], %s2096
          %s2098 = sand.u32 %s143, 1
          %s2099 = smul.addr %s2098, 192
          %s2100 = scalar_lea.vmem [#allocation10], %s2099
          %2101 = dma.done %s2097, 3072
        $region68: #{tpu_custom_call.1} parent=63 // pred_fallthru
          _
      $region64: #{tpu_custom_call.1} parent=5 // pred_fallthru
        _
    $region6: #{tpu_custom_call.1} parent=1 // loop_footer
      %s23 = sadd.s32 1, %s19
    $region7: #{tpu_custom_call.1} parent=1 // loop_footer_branch
      %18 = sbr.rel target = $region3
    $region8: #{tpu_custom_call.1} parent=1 // loop_exit
      _
    %2102 = vsyncpa [#allocation3], 1
    %s2103 = scalar_lea.sflag [#allocation3], 1
    %2104 = vsyncpa %s2103, 1
    %2105 = vsyncpa [#allocation6], 1
    %2106 = vsyncpa [#allocation9], 1
    %2107 = vsyncpa [#allocation4], 1
    %s2108 = scalar_lea.sflag [#allocation4], 1
    %2109 = vsyncpa %s2108, 1

</llo_original>
